<compile_context>
chip_gen: v7x
topology: tpu7x:2x2x1
jax: 0.10.0
libtpu: 0.0.40
codegen_flags: <defaults>
</compile_context>

<pallas_src>
import functools

import jax
import jax.numpy as jnp
from jax import lax
from jax.experimental import pallas as pl
from jax.experimental.pallas import tpu as pltpu


# ----------------------------- fused Pallas kernel ---------------------------

def _vat_fused_kernel(logit_ref, x_ref, d0_ref, w_ref, b_ref, loss_ref, *,
                      n_power, xi, epsilon):
    x = x_ref[...]            # (B, F)
    w = w_ref[...]            # (F, K)   single copy; W^T never materialized
    b = b_ref[...]            # (1, K)
    s = logit_ref[...]        # (B, K)   teacher logits

    inv_b = 1.0 / s.shape[0]  # fold the static /B into a constant multiply

    # Teacher log-softmax / softmax, computed once and reused every iteration.
    s_max = jnp.max(s, axis=1, keepdims=True)
    s_sh = s - s_max
    log_p = s_sh - jnp.log(jnp.sum(jnp.exp(s_sh), axis=1, keepdims=True))
    p = jnp.exp(log_p)

    def normalize_and_scale(d, scale):
        # F.normalize(p=2, dim=1, eps=1e-12): d / max(||d||_2, 1e-12), then * scale.
        norm = jnp.sqrt(jnp.sum(d * d, axis=1, keepdims=True))
        inv = pl.reciprocal(jnp.maximum(norm, 1e-12))
        return d * (scale * inv)

    def perturbed_logits(d_scaled):
        # (x + d) @ W + b on the MXU with f32 accumulation.
        # TODO(synk): for realistic model sizes cast the matmul operands to bf16
        # (keep preferred_element_type=f32); kept f32 here for exact parity.
        return jnp.dot(x + d_scaled, w, preferred_element_type=jnp.float32) + b

    def power_step(_, d):
        d_scaled = normalize_and_scale(d, xi)
        t = perturbed_logits(d_scaled)                         # (B, K)
        t_max = jnp.max(t, axis=1, keepdims=True)
        e = jnp.exp(t - t_max)
        q = e * pl.reciprocal(jnp.sum(e, axis=1, keepdims=True))
        g = (q - p) * inv_b                                    # dKL/dt
        # dKL/dd = g @ W^T: contract over K against the same W ref (no transpose).
        return lax.dot_general(g, w, dimension_numbers=(((1,), (1,)), ((), ())),
                               preferred_element_type=jnp.float32)

    d = lax.fori_loop(0, n_power, power_step, d0_ref[...], unroll=True)

    # Final adversarial direction and batchmean KL loss (fused, no extra launch).
    r = normalize_and_scale(d, epsilon)
    t = perturbed_logits(r)
    t_max = jnp.max(t, axis=1, keepdims=True)
    t_sh = t - t_max
    log_q = t_sh - jnp.log(jnp.sum(jnp.exp(t_sh), axis=1, keepdims=True))
    loss_ref[0, 0] = jnp.sum(p * (log_p - log_q)) * inv_b


# ----------------------------- wrapper ----------------------------------------

def vat_forward(x, logit, w, b, d0, *, n_power, xi, epsilon):
    """Mirrors VAT.forward(X, logit) with a linear model logits = flatten(x) @ w + b."""
    B = x.shape[0]
    x_flat = x.reshape(B, -1).astype(jnp.float32)
    d0_flat = d0.reshape(B, -1).astype(jnp.float32)
    F_dim = x_flat.shape[1]
    K = w.shape[1]
    w = w.astype(jnp.float32)
    b2 = b.reshape(1, K).astype(jnp.float32)
    logit = logit.astype(jnp.float32)

    kernel = functools.partial(
        _vat_fused_kernel, n_power=int(n_power), xi=float(xi), epsilon=float(epsilon))

    n_matmuls = 2 * int(n_power) + 1
    cost = pl.CostEstimate(
        flops=2 * B * F_dim * K * n_matmuls,
        transcendentals=B * K * (2 * int(n_power) + 3),
        bytes_accessed=4 * (2 * B * F_dim + F_dim * K + 2 * B * K) + 4,
    )

    vmem = pl.BlockSpec(memory_space=pltpu.MemorySpace.VMEM)
    loss = pl.pallas_call(
        kernel,
        out_shape=jax.ShapeDtypeStruct((1, 1), jnp.float32),
        in_specs=[vmem, vmem, vmem, vmem, vmem],   # whole arrays resident in VMEM
        out_specs=pl.BlockSpec(memory_space=pltpu.MemorySpace.SMEM),
        compiler_params=pltpu.CompilerParams(vmem_limit_bytes=32 * 1024 * 1024),
        cost_estimate=cost,
    )(logit, x_flat, d0_flat, w, b2)
    return loss[0, 0]


# ----------------------------- pure-JAX reference ----------------------------

def _ref_vat(x, logit, w, b, d0, *, n_power, xi, epsilon):
    B = x.shape[0]
    xf = x.reshape(B, -1).astype(jnp.float32)
    df = d0.reshape(B, -1).astype(jnp.float32)

    def normalize(d):
        n = jnp.sqrt(jnp.sum(d * d, axis=1, keepdims=True))
        return d / jnp.maximum(n, 1e-12)

    def kl(s, t):
        logp = jax.nn.log_softmax(s, axis=1)
        logq = jax.nn.log_softmax(t, axis=1)
        return jnp.sum(jnp.exp(logp) * (logp - logq)) / s.shape[0]

    def model(z):
        return z @ w + b

    for _ in range(n_power):
        ds = xi * normalize(df)
        df = jax.grad(lambda dd: kl(logit, model(xf + dd)))(ds)

    r = epsilon * normalize(df)
    return kl(lax.stop_gradient(logit), model(xf + r))


# ----------------------------- main -------------------------------------------

if __name__ == "__main__":
    key = jax.random.PRNGKey(0)
    kx, kw, kb, kd = jax.random.split(key, 4)

    B, C, H, W = 2, 4, 16, 16
    K = 8
    F_dim = C * H * W

    # VAT hyperparameters (constructor args n_power, xi, radius).
    n_power, xi, epsilon = 2, 0.5, 2.0

    # Deterministic synthetic inputs / parameters.
    x = jax.random.normal(kx, (B, C, H, W), dtype=jnp.float32)
    w = jax.random.normal(kw, (F_dim, K), dtype=jnp.float32) * 0.05
    b = jax.random.normal(kb, (K,), dtype=jnp.float32) * 0.1
    # "logit" argument = clean model output (as in standard VAT usage).
    logit = x.reshape(B, -1) @ w + b
    # d = torch.randn_like(x)  (generated outside the kernel, shared with the reference)
    d0 = jax.random.normal(kd, (B, C, H, W), dtype=jnp.float32)

    loss = vat_forward(x, logit, w, b, d0, n_power=n_power, xi=xi, epsilon=epsilon)
    loss = jax.block_until_ready(loss)

    ref = jax.block_until_ready(
        _ref_vat(x, logit, w, b, d0, n_power=n_power, xi=xi, epsilon=epsilon))

    assert jnp.isfinite(loss), "VAT loss is not finite"
    assert abs(float(loss) - float(ref)) <= 1e-3 * max(1.0, abs(float(ref))), (
        float(loss), float(ref))

    print("KERNEL_OK")
</pallas_src>

<mosaic_0001>
module attributes {stable_mosaic.version = 11 : i64} {
  func.func @_vat_fused_kernel(%arg0: memref<2x8xf32, #tpu.memory_space<vmem>>, %arg1: memref<2x1024xf32, #tpu.memory_space<vmem>>, %arg2: memref<2x1024xf32, #tpu.memory_space<vmem>>, %arg3: memref<1024x8xf32, #tpu.memory_space<vmem>>, %arg4: memref<1x8xf32, #tpu.memory_space<vmem>>, %arg5: memref<1x1xf32, #tpu.memory_space<smem>>) attributes {dimension_semantics = [], scalar_prefetch = 0 : i64, scratch_operands = 0 : i64, tpu.core_type = #tpu.core_type<tc>} {
    %c0 = arith.constant 0 : index
    %c0_0 = arith.constant 0 : index
    %0 = vector.load %arg1[%c0, %c0_0] : memref<2x1024xf32, #tpu.memory_space<vmem>>, vector<2x1024xf32>
    %c0_1 = arith.constant 0 : index
    %c0_2 = arith.constant 0 : index
    %1 = vector.load %arg3[%c0_1, %c0_2] : memref<1024x8xf32, #tpu.memory_space<vmem>>, vector<1024x8xf32>
    %c0_3 = arith.constant 0 : index
    %c0_4 = arith.constant 0 : index
    %2 = vector.load %arg4[%c0_3, %c0_4] : memref<1x8xf32, #tpu.memory_space<vmem>>, vector<1x8xf32>
    %c0_5 = arith.constant 0 : index
    %c0_6 = arith.constant 0 : index
    %3 = vector.load %arg0[%c0_5, %c0_6] : memref<2x8xf32, #tpu.memory_space<vmem>>, vector<2x8xf32>
    %cst = arith.constant dense<0xFF800000> : vector<2xf32>
    %4 = vector.multi_reduction <maximumf>, %3, %cst [1] : vector<2x8xf32> to vector<2xf32>
    %5 = vector.shape_cast %4 : vector<2xf32> to vector<2x1xf32>
    %6 = vector.broadcast %5 : vector<2x1xf32> to vector<2x8xf32>
    %7 = arith.subf %3, %6 : vector<2x8xf32>
    %8 = math.exp %7 : vector<2x8xf32>
    %cst_7 = arith.constant dense<0.000000e+00> : vector<2xf32>
    %9 = vector.multi_reduction <add>, %8, %cst_7 [1] : vector<2x8xf32> to vector<2xf32>
    %10 = vector.shape_cast %9 : vector<2xf32> to vector<2x1xf32>
    %11 = math.log %10 : vector<2x1xf32>
    %12 = vector.broadcast %11 : vector<2x1xf32> to vector<2x8xf32>
    %13 = arith.subf %7, %12 : vector<2x8xf32>
    %14 = math.exp %13 : vector<2x8xf32>
    %c0_8 = arith.constant 0 : index
    %c0_9 = arith.constant 0 : index
    %15 = vector.load %arg2[%c0_8, %c0_9] : memref<2x1024xf32, #tpu.memory_space<vmem>>, vector<2x1024xf32>
    %c0_i32 = arith.constant 0 : i32
    %16 = arith.mulf %15, %15 : vector<2x1024xf32>
    %cst_10 = arith.constant dense<0.000000e+00> : vector<2xf32>
    %17 = vector.multi_reduction <add>, %16, %cst_10 [1] : vector<2x1024xf32> to vector<2xf32>
    %18 = vector.shape_cast %17 : vector<2xf32> to vector<2x1xf32>
    %19 = math.sqrt %18 : vector<2x1xf32>
    %cst_11 = arith.constant 9.99999996E-13 : f32
    %20 = vector.broadcast %cst_11 : f32 to vector<2x1xf32>
    %21 = arith.maximumf %19, %20 : vector<2x1xf32>
    %22 = tpu.reciprocal %21 : vector<2x1xf32> -> vector<2x1xf32>
    %cst_12 = arith.constant 5.000000e-01 : f32
    %23 = vector.broadcast %cst_12 : f32 to vector<2x1xf32>
    %24 = arith.mulf %23, %22 : vector<2x1xf32>
    %25 = vector.broadcast %24 : vector<2x1xf32> to vector<2x1024xf32>
    %26 = arith.mulf %15, %25 : vector<2x1024xf32>
    %27 = arith.addf %0, %26 : vector<2x1024xf32>
    %cst_13 = arith.constant dense<0.000000e+00> : vector<2x8xf32>
    %28 = tpu.matmul %27, %1, %cst_13 {dimension_numbers = #tpu.dot_dimension_numbers<[1], [0], [0], [1], [0, 0, 1, 1], [], []>} : vector<2x1024xf32>, vector<1024x8xf32>, vector<2x8xf32> -> vector<2x8xf32>
    %29 = vector.broadcast %2 : vector<1x8xf32> to vector<2x8xf32>
    %30 = arith.addf %28, %29 : vector<2x8xf32>
    %cst_14 = arith.constant dense<0xFF800000> : vector<2xf32>
    %31 = vector.multi_reduction <maximumf>, %30, %cst_14 [1] : vector<2x8xf32> to vector<2xf32>
    %32 = vector.shape_cast %31 : vector<2xf32> to vector<2x1xf32>
    %33 = vector.broadcast %32 : vector<2x1xf32> to vector<2x8xf32>
    %34 = arith.subf %30, %33 : vector<2x8xf32>
    %35 = math.exp %34 : vector<2x8xf32>
    %cst_15 = arith.constant dense<0.000000e+00> : vector<2xf32>
    %36 = vector.multi_reduction <add>, %35, %cst_15 [1] : vector<2x8xf32> to vector<2xf32>
    %37 = vector.shape_cast %36 : vector<2xf32> to vector<2x1xf32>
    %38 = tpu.reciprocal %37 : vector<2x1xf32> -> vector<2x1xf32>
    %39 = vector.broadcast %38 : vector<2x1xf32> to vector<2x8xf32>
    %40 = arith.mulf %35, %39 : vector<2x8xf32>
    %41 = arith.subf %40, %14 : vector<2x8xf32>
    %cst_16 = arith.constant 5.000000e-01 : f32
    %42 = vector.broadcast %cst_16 : f32 to vector<2x8xf32>
    %43 = arith.mulf %41, %42 : vector<2x8xf32>
    %cst_17 = arith.constant dense<0.000000e+00> : vector<2x1024xf32>
    %44 = tpu.matmul %43, %1, %cst_17 {dimension_numbers = #tpu.dot_dimension_numbers<[1], [1], [0], [0], [0, 0, 1, 0], [], []>} : vector<2x8xf32>, vector<1024x8xf32>, vector<2x1024xf32> -> vector<2x1024xf32>
    %c1_i32 = arith.constant 1 : i32
    %45 = arith.mulf %44, %44 : vector<2x1024xf32>
    %cst_18 = arith.constant dense<0.000000e+00> : vector<2xf32>
    %46 = vector.multi_reduction <add>, %45, %cst_18 [1] : vector<2x1024xf32> to vector<2xf32>
    %47 = vector.shape_cast %46 : vector<2xf32> to vector<2x1xf32>
    %48 = math.sqrt %47 : vector<2x1xf32>
    %cst_19 = arith.constant 9.99999996E-13 : f32
    %49 = vector.broadcast %cst_19 : f32 to vector<2x1xf32>
    %50 = arith.maximumf %48, %49 : vector<2x1xf32>
    %51 = tpu.reciprocal %50 : vector<2x1xf32> -> vector<2x1xf32>
    %cst_20 = arith.constant 5.000000e-01 : f32
    %52 = vector.broadcast %cst_20 : f32 to vector<2x1xf32>
    %53 = arith.mulf %52, %51 : vector<2x1xf32>
    %54 = vector.broadcast %53 : vector<2x1xf32> to vector<2x1024xf32>
    %55 = arith.mulf %44, %54 : vector<2x1024xf32>
    %56 = arith.addf %0, %55 : vector<2x1024xf32>
    %cst_21 = arith.constant dense<0.000000e+00> : vector<2x8xf32>
    %57 = tpu.matmul %56, %1, %cst_21 {dimension_numbers = #tpu.dot_dimension_numbers<[1], [0], [0], [1], [0, 0, 1, 1], [], []>} : vector<2x1024xf32>, vector<1024x8xf32>, vector<2x8xf32> -> vector<2x8xf32>
    %58 = vector.broadcast %2 : vector<1x8xf32> to vector<2x8xf32>
    %59 = arith.addf %57, %58 : vector<2x8xf32>
    %cst_22 = arith.constant dense<0xFF800000> : vector<2xf32>
    %60 = vector.multi_reduction <maximumf>, %59, %cst_22 [1] : vector<2x8xf32> to vector<2xf32>
    %61 = vector.shape_cast %60 : vector<2xf32> to vector<2x1xf32>
    %62 = vector.broadcast %61 : vector<2x1xf32> to vector<2x8xf32>
    %63 = arith.subf %59, %62 : vector<2x8xf32>
    %64 = math.exp %63 : vector<2x8xf32>
    %cst_23 = arith.constant dense<0.000000e+00> : vector<2xf32>
    %65 = vector.multi_reduction <add>, %64, %cst_23 [1] : vector<2x8xf32> to vector<2xf32>
    %66 = vector.shape_cast %65 : vector<2xf32> to vector<2x1xf32>
    %67 = tpu.reciprocal %66 : vector<2x1xf32> -> vector<2x1xf32>
    %68 = vector.broadcast %67 : vector<2x1xf32> to vector<2x8xf32>
    %69 = arith.mulf %64, %68 : vector<2x8xf32>
    %70 = arith.subf %69, %14 : vector<2x8xf32>
    %cst_24 = arith.constant 5.000000e-01 : f32
    %71 = vector.broadcast %cst_24 : f32 to vector<2x8xf32>
    %72 = arith.mulf %70, %71 : vector<2x8xf32>
    %cst_25 = arith.constant dense<0.000000e+00> : vector<2x1024xf32>
    %73 = tpu.matmul %72, %1, %cst_25 {dimension_numbers = #tpu.dot_dimension_numbers<[1], [1], [0], [0], [0, 0, 1, 0], [], []>} : vector<2x8xf32>, vector<1024x8xf32>, vector<2x1024xf32> -> vector<2x1024xf32>
    %74 = arith.mulf %73, %73 : vector<2x1024xf32>
    %cst_26 = arith.constant dense<0.000000e+00> : vector<2xf32>
    %75 = vector.multi_reduction <add>, %74, %cst_26 [1] : vector<2x1024xf32> to vector<2xf32>
    %76 = vector.shape_cast %75 : vector<2xf32> to vector<2x1xf32>
    %77 = math.sqrt %76 : vector<2x1xf32>
    %cst_27 = arith.constant 9.99999996E-13 : f32
    %78 = vector.broadcast %cst_27 : f32 to vector<2x1xf32>
    %79 = arith.maximumf %77, %78 : vector<2x1xf32>
    %80 = tpu.reciprocal %79 : vector<2x1xf32> -> vector<2x1xf32>
    %cst_28 = arith.constant 2.000000e+00 : f32
    %81 = vector.broadcast %cst_28 : f32 to vector<2x1xf32>
    %82 = arith.mulf %81, %80 : vector<2x1xf32>
    %83 = vector.broadcast %82 : vector<2x1xf32> to vector<2x1024xf32>
    %84 = arith.mulf %73, %83 : vector<2x1024xf32>
    %85 = arith.addf %0, %84 : vector<2x1024xf32>
    %cst_29 = arith.constant dense<0.000000e+00> : vector<2x8xf32>
    %86 = tpu.matmul %85, %1, %cst_29 {dimension_numbers = #tpu.dot_dimension_numbers<[1], [0], [0], [1], [0, 0, 1, 1], [], []>} : vector<2x1024xf32>, vector<1024x8xf32>, vector<2x8xf32> -> vector<2x8xf32>
    %87 = vector.broadcast %2 : vector<1x8xf32> to vector<2x8xf32>
    %88 = arith.addf %86, %87 : vector<2x8xf32>
    %cst_30 = arith.constant dense<0xFF800000> : vector<2xf32>
    %89 = vector.multi_reduction <maximumf>, %88, %cst_30 [1] : vector<2x8xf32> to vector<2xf32>
    %90 = vector.shape_cast %89 : vector<2xf32> to vector<2x1xf32>
    %91 = vector.broadcast %90 : vector<2x1xf32> to vector<2x8xf32>
    %92 = arith.subf %88, %91 : vector<2x8xf32>
    %93 = math.exp %92 : vector<2x8xf32>
    %cst_31 = arith.constant dense<0.000000e+00> : vector<2xf32>
    %94 = vector.multi_reduction <add>, %93, %cst_31 [1] : vector<2x8xf32> to vector<2xf32>
    %95 = vector.shape_cast %94 : vector<2xf32> to vector<2x1xf32>
    %96 = math.log %95 : vector<2x1xf32>
    %97 = vector.broadcast %96 : vector<2x1xf32> to vector<2x8xf32>
    %98 = arith.subf %92, %97 : vector<2x8xf32>
    %99 = arith.subf %13, %98 : vector<2x8xf32>
    %100 = arith.mulf %14, %99 : vector<2x8xf32>
    %101 = vector.shape_cast %100 : vector<2x8xf32> to vector<1x2x8xf32>
    %cst_32 = arith.constant dense<0.000000e+00> : vector<1xf32>
    %102 = vector.multi_reduction <add>, %101, %cst_32 [1, 2] : vector<1x2x8xf32> to vector<1xf32>
    %103 = vector.shape_cast %102 : vector<1xf32> to vector<1x1x1xf32>
    %104 = vector.extract %103[0, 0, 0] : f32 from vector<1x1x1xf32>
    %cst_33 = arith.constant 5.000000e-01 : f32
    %105 = arith.mulf %104, %cst_33 : f32
    %c0_34 = arith.constant 0 : index
    %c0_35 = arith.constant 0 : index
    %106 = memref.load %arg5[%c0_34, %c0_35] : memref<1x1xf32, #tpu.memory_space<smem>>
    memref.store %105, %arg5[%c0_34, %c0_35] : memref<1x1xf32, #tpu.memory_space<smem>>
    return
  }
}

</mosaic_0001>

<llo_original>
// kernel: tpu_custom_call.1
$region0: #{tpu_custom_call.1}
  #allocation0 [shape = 'u32[]', space=smem, size = 0x4, offset = 0x4, fixed_abs, tag = 'smem constant byte address 0x4 - core index']
  #allocation1 [shape = 'u32[144,128]{1,0:T(1,128)}', space=vmem, size = 0x12000, scoped, tag = 'internal scratch']
  %s0 = inlined_call_operand.vmem [shape: f32[2,8], index: 0, kind: input, shape index: {}]
  %s1 = inlined_call_operand.vmem [shape: f32[2,1024], index: 1, kind: input, shape index: {}]
  %s2 = inlined_call_operand.vmem [shape: f32[2,1024], index: 2, kind: input, shape index: {}]
  %s3 = inlined_call_operand.vmem [shape: f32[1024,8], index: 3, kind: input, shape index: {}]
  %s4 = inlined_call_operand.vmem [shape: f32[1,8], index: 4, kind: input, shape index: {}]
  %s5 = inlined_call_operand.hbm [shape: f32[1,1], index: 5, kind: output, shape index: {}]
  %s6 = sld [smem:[#allocation0]]
  $region30: #{tpu_custom_call.1} parent=0
    _
  %s8 = ssub.s32 1, %s6
  %s9 = scalar_select 0, %s8, %s6
  $region1: #{tpu_custom_call.1} parent=0
    #allocation2 [shape = 'u8[512]{0}', space=smem, size = 0x200, scoped, tag = 'output window, operand 0, single buffered']
    #allocation3 [shape = 's32[1]{0}', space=sflag, size = 0x4, scoped, tag = 'scoped memory for tpu_custom_call.1']
    %10 = vsyncpa [#allocation3], 0
    // Predicated region
    $region2: #{tpu_custom_call.1} parent=1 // pred_check
      _
    $region3: #{tpu_custom_call.1} parent=1 // pred_check_branch
      %12 = sbr.rel (0) target = $region5
    $region4: #{tpu_custom_call.1} parent=1 // pred_region
      _
    $region5: #{tpu_custom_call.1} parent=1 // pred_fallthru
      _
    // Predicated region
    $region6: #{tpu_custom_call.1} parent=1 // pred_check
      _
    $region7: #{tpu_custom_call.1} parent=1 // pred_check_branch
      %14 = sbr.rel (0) target = $region9
    $region8: #{tpu_custom_call.1} parent=1 // pred_region
      _
    $region9: #{tpu_custom_call.1} parent=1 // pred_fallthru
      _
    // Predicated region
    $region10: #{tpu_custom_call.1} parent=1 // pred_check
      _
    $region11: #{tpu_custom_call.1} parent=1 // pred_check_branch
      %16 = sbr.rel (0) target = $region13
    $region12: #{tpu_custom_call.1} parent=1 // pred_region
      _
    $region13: #{tpu_custom_call.1} parent=1 // pred_fallthru
      _
    // Predicated region
    $region14: #{tpu_custom_call.1} parent=1 // pred_check
      _
    $region15: #{tpu_custom_call.1} parent=1 // pred_check_branch
      %18 = sbr.rel (0) target = $region17
    $region16: #{tpu_custom_call.1} parent=1 // pred_region
      _
    $region17: #{tpu_custom_call.1} parent=1 // pred_fallthru
      _
    // Predicated region
    $region18: #{tpu_custom_call.1} parent=1 // pred_check
      _
    $region19: #{tpu_custom_call.1} parent=1 // pred_check_branch
      %20 = sbr.rel (0) target = $region21
    $region20: #{tpu_custom_call.1} parent=1 // pred_region
      _
    $region21: #{tpu_custom_call.1} parent=1 // pred_fallthru
      _
    %v21 = vld [vmem:[%s1] sm:$0xff]
    %v22 = vld [vmem:[%s1 + $0x8] sm:$0xff]
    %v23 = vld [vmem:[%s3] sm:$0xff]
    %v24 = vld [vmem:[%s3 + $0x8] sm:$0xff]
    %v25 = vld [vmem:[%s3 + $0x10] sm:$0xff]
    %v26 = vld [vmem:[%s3 + $0x18] sm:$0xff]
    %v27 = vld [vmem:[%s3 + $0x20] sm:$0xff]
    %v28 = vld [vmem:[%s3 + $0x28] sm:$0xff]
    %v29 = vld [vmem:[%s3 + $0x30] sm:$0xff]
    %v30 = vld [vmem:[%s3 + $0x38] sm:$0xff]
    %v31 = vld [vmem:[%s3 + $0x40] sm:$0xff]
    %v32 = vld [vmem:[%s3 + $0x48] sm:$0xff]
    %v33 = vld [vmem:[%s3 + $0x50] sm:$0xff]
    %v34 = vld [vmem:[%s3 + $0x58] sm:$0xff]
    %v35 = vld [vmem:[%s3 + $0x60] sm:$0xff]
    %v36 = vld [vmem:[%s3 + $0x68] sm:$0xff]
    %v37 = vld [vmem:[%s3 + $0x70] sm:$0xff]
    %v38 = vld [vmem:[%s3 + $0x78] sm:$0xff]
    %v39 = vld [vmem:[%s3 + $0x80] sm:$0xff]
    %v40 = vld [vmem:[%s3 + $0x88] sm:$0xff]
    %v41 = vld [vmem:[%s3 + $0x90] sm:$0xff]
    %v42 = vld [vmem:[%s3 + $0x98] sm:$0xff]
    %v43 = vld [vmem:[%s3 + $0xa0] sm:$0xff]
    %v44 = vld [vmem:[%s3 + $0xa8] sm:$0xff]
    %v45 = vld [vmem:[%s3 + $0xb0] sm:$0xff]
    %v46 = vld [vmem:[%s3 + $0xb8] sm:$0xff]
    %v47 = vld [vmem:[%s3 + $0xc0] sm:$0xff]
    %v48 = vld [vmem:[%s3 + $0xc8] sm:$0xff]
    %v49 = vld [vmem:[%s3 + $0xd0] sm:$0xff]
    %v50 = vld [vmem:[%s3 + $0xd8] sm:$0xff]
    %v51 = vld [vmem:[%s3 + $0xe0] sm:$0xff]
    %v52 = vld [vmem:[%s3 + $0xe8] sm:$0xff]
    %v53 = vld [vmem:[%s3 + $0xf0] sm:$0xff]
    %v54 = vld [vmem:[%s3 + $0xf8] sm:$0xff]
    %v55 = vld [vmem:[%s3 + $0x100] sm:$0xff]
    %v56 = vld [vmem:[%s3 + $0x108] sm:$0xff]
    %v57 = vld [vmem:[%s3 + $0x110] sm:$0xff]
    %v58 = vld [vmem:[%s3 + $0x118] sm:$0xff]
    %v59 = vld [vmem:[%s3 + $0x120] sm:$0xff]
    %v60 = vld [vmem:[%s3 + $0x128] sm:$0xff]
    %v61 = vld [vmem:[%s3 + $0x130] sm:$0xff]
    %v62 = vld [vmem:[%s3 + $0x138] sm:$0xff]
    %v63 = vld [vmem:[%s3 + $0x140] sm:$0xff]
    %v64 = vld [vmem:[%s3 + $0x148] sm:$0xff]
    %v65 = vld [vmem:[%s3 + $0x150] sm:$0xff]
    %v66 = vld [vmem:[%s3 + $0x158] sm:$0xff]
    %v67 = vld [vmem:[%s3 + $0x160] sm:$0xff]
    %v68 = vld [vmem:[%s3 + $0x168] sm:$0xff]
    %v69 = vld [vmem:[%s3 + $0x170] sm:$0xff]
    %v70 = vld [vmem:[%s3 + $0x178] sm:$0xff]
    %v71 = vld [vmem:[%s3 + $0x180] sm:$0xff]
    %v72 = vld [vmem:[%s3 + $0x188] sm:$0xff]
    %v73 = vld [vmem:[%s3 + $0x190] sm:$0xff]
    %v74 = vld [vmem:[%s3 + $0x198] sm:$0xff]
    %v75 = vld [vmem:[%s3 + $0x1a0] sm:$0xff]
    %v76 = vld [vmem:[%s3 + $0x1a8] sm:$0xff]
    %v77 = vld [vmem:[%s3 + $0x1b0] sm:$0xff]
    %v78 = vld [vmem:[%s3 + $0x1b8] sm:$0xff]
    %v79 = vld [vmem:[%s3 + $0x1c0] sm:$0xff]
    %v80 = vld [vmem:[%s3 + $0x1c8] sm:$0xff]
    %v81 = vld [vmem:[%s3 + $0x1d0] sm:$0xff]
    %v82 = vld [vmem:[%s3 + $0x1d8] sm:$0xff]
    %v83 = vld [vmem:[%s3 + $0x1e0] sm:$0xff]
    %v84 = vld [vmem:[%s3 + $0x1e8] sm:$0xff]
    %v85 = vld [vmem:[%s3 + $0x1f0] sm:$0xff]
    %v86 = vld [vmem:[%s3 + $0x1f8] sm:$0xff]
    %v87 = vld [vmem:[%s3 + $0x200] sm:$0xff]
    %v88 = vld [vmem:[%s3 + $0x208] sm:$0xff]
    %v89 = vld [vmem:[%s3 + $0x210] sm:$0xff]
    %v90 = vld [vmem:[%s3 + $0x218] sm:$0xff]
    %v91 = vld [vmem:[%s3 + $0x220] sm:$0xff]
    %v92 = vld [vmem:[%s3 + $0x228] sm:$0xff]
    %v93 = vld [vmem:[%s3 + $0x230] sm:$0xff]
    %v94 = vld [vmem:[%s3 + $0x238] sm:$0xff]
    %v95 = vld [vmem:[%s3 + $0x240] sm:$0xff]
    %v96 = vld [vmem:[%s3 + $0x248] sm:$0xff]
    %v97 = vld [vmem:[%s3 + $0x250] sm:$0xff]
    %v98 = vld [vmem:[%s3 + $0x258] sm:$0xff]
    %v99 = vld [vmem:[%s3 + $0x260] sm:$0xff]
    %v100 = vld [vmem:[%s3 + $0x268] sm:$0xff]
    %v101 = vld [vmem:[%s3 + $0x270] sm:$0xff]
    %v102 = vld [vmem:[%s3 + $0x278] sm:$0xff]
    %v103 = vld [vmem:[%s3 + $0x280] sm:$0xff]
    %v104 = vld [vmem:[%s3 + $0x288] sm:$0xff]
    %v105 = vld [vmem:[%s3 + $0x290] sm:$0xff]
    %v106 = vld [vmem:[%s3 + $0x298] sm:$0xff]
    %v107 = vld [vmem:[%s3 + $0x2a0] sm:$0xff]
    %v108 = vld [vmem:[%s3 + $0x2a8] sm:$0xff]
    %v109 = vld [vmem:[%s3 + $0x2b0] sm:$0xff]
    %v110 = vld [vmem:[%s3 + $0x2b8] sm:$0xff]
    %v111 = vld [vmem:[%s3 + $0x2c0] sm:$0xff]
    %v112 = vld [vmem:[%s3 + $0x2c8] sm:$0xff]
    %v113 = vld [vmem:[%s3 + $0x2d0] sm:$0xff]
    %v114 = vld [vmem:[%s3 + $0x2d8] sm:$0xff]
    %v115 = vld [vmem:[%s3 + $0x2e0] sm:$0xff]
    %v116 = vld [vmem:[%s3 + $0x2e8] sm:$0xff]
    %v117 = vld [vmem:[%s3 + $0x2f0] sm:$0xff]
    %v118 = vld [vmem:[%s3 + $0x2f8] sm:$0xff]
    %v119 = vld [vmem:[%s3 + $0x300] sm:$0xff]
    %v120 = vld [vmem:[%s3 + $0x308] sm:$0xff]
    %v121 = vld [vmem:[%s3 + $0x310] sm:$0xff]
    %v122 = vld [vmem:[%s3 + $0x318] sm:$0xff]
    %v123 = vld [vmem:[%s3 + $0x320] sm:$0xff]
    %v124 = vld [vmem:[%s3 + $0x328] sm:$0xff]
    %v125 = vld [vmem:[%s3 + $0x330] sm:$0xff]
    %v126 = vld [vmem:[%s3 + $0x338] sm:$0xff]
    %v127 = vld [vmem:[%s3 + $0x340] sm:$0xff]
    %v128 = vld [vmem:[%s3 + $0x348] sm:$0xff]
    %v129 = vld [vmem:[%s3 + $0x350] sm:$0xff]
    %v130 = vld [vmem:[%s3 + $0x358] sm:$0xff]
    %v131 = vld [vmem:[%s3 + $0x360] sm:$0xff]
    %v132 = vld [vmem:[%s3 + $0x368] sm:$0xff]
    %v133 = vld [vmem:[%s3 + $0x370] sm:$0xff]
    %v134 = vld [vmem:[%s3 + $0x378] sm:$0xff]
    %v135 = vld [vmem:[%s3 + $0x380] sm:$0xff]
    %v136 = vld [vmem:[%s3 + $0x388] sm:$0xff]
    %v137 = vld [vmem:[%s3 + $0x390] sm:$0xff]
    %v138 = vld [vmem:[%s3 + $0x398] sm:$0xff]
    %v139 = vld [vmem:[%s3 + $0x3a0] sm:$0xff]
    %v140 = vld [vmem:[%s3 + $0x3a8] sm:$0xff]
    %v141 = vld [vmem:[%s3 + $0x3b0] sm:$0xff]
    %v142 = vld [vmem:[%s3 + $0x3b8] sm:$0xff]
    %v143 = vld [vmem:[%s3 + $0x3c0] sm:$0xff]
    %v144 = vld [vmem:[%s3 + $0x3c8] sm:$0xff]
    %v145 = vld [vmem:[%s3 + $0x3d0] sm:$0xff]
    %v146 = vld [vmem:[%s3 + $0x3d8] sm:$0xff]
    %v147 = vld [vmem:[%s3 + $0x3e0] sm:$0xff]
    %v148 = vld [vmem:[%s3 + $0x3e8] sm:$0xff]
    %v149 = vld [vmem:[%s3 + $0x3f0] sm:$0xff]
    %v150 = vld [vmem:[%s3 + $0x3f8] sm:$0xff]
    %v151 = vld [vmem:[%s4] sm:$0x1]
    %v152 = vld [vmem:[%s0] sm:$0x3]
    %vm153 = vcmask 58368
    %v154 = vsel %vm153, %v152, -inf
    %155 = vmax.xlane.f32.xlu0 %v154
    %v156 = vpop.xlane.xlu0 %155
    %v157 = vsub.f32 %v152, %v156
    %v158 = vmul.f32 %v157, 1.442695
    %v159 = vpow.pop %v158
    %v160 = vsel %vm153, %v159, 0.0
    %161 = vadd.xlane.f32.xlu0 %v160
    %v162 = vpop.xlane.xlu0 %161
    %v163 = vlog2.pop %v162
    %v164 = vmul.f32 %v163, 0.6931472
    %v165 = vsub.f32 %v157, %v164
    %v166 = vmul.f32 %v165, 1.442695
    %v167 = vpow.pop %v166
    %v168 = vld [vmem:[%s2] sm:$0xff]
    %v169 = vld [vmem:[%s2 + $0x8] sm:$0xff]
    %v170 = vmul.f32 %v168, %v168
    %v171 = vmul.f32 %v169, %v169
    %v174 = vcombine.high %v170, %v170
    %v176 = vunpack.c.l.s4 1983009808
    %v177 = vunpack.c.0.s8 %v176
    %v178 = vlaneseq
    %v179 = vshrl.u32 %v178, 7
    %v180 = vsub.s32 %v177, %v179
    %v181 = vrot.slane %v170, %v180
    %v183 = vunpack.c.l.s4 1983009808
    %v184 = vunpack.c.0.s8 %v183
    %v185 = vlaneseq
    %v186 = vshrl.u32 %v185, 7
    %v187 = vsub.s32 %v184, %v186
    %v188 = vrot.slane %v174, %v187
    %v189 = vcombine.high %v181, %v181
    %v190 = vcombine.high %v188, %v188
    %v191 = vcombine.high %v171, %v171
    %v193 = vunpack.c.l.s4 1983009808
    %v194 = vunpack.c.0.s8 %v193
    %v195 = vlaneseq
    %v196 = vshrl.u32 %v195, 7
    %v197 = vsub.s32 %v194, %v196
    %v198 = vrot.slane %v171, %v197
    %v200 = vunpack.c.l.s4 1983009808
    %v201 = vunpack.c.0.s8 %v200
    %v202 = vlaneseq
    %v203 = vshrl.u32 %v202, 7
    %v204 = vsub.s32 %v201, %v203
    %v205 = vrot.slane %v191, %v204
    %v206 = vcombine.high %v198, %v198
    %v207 = vcombine.high %v205, %v205
    %vm216 = vcmask 1041408
    %v217 = vsel %vm216, %v181, 0.0
    %v218 = vsel %vm216, %v189, 0.0
    %v219 = vadd.f32 %v217, %v218
    %v220 = vsel %vm216, %v188, 0.0
    %v221 = vadd.f32 %v219, %v220
    %v222 = vsel %vm216, %v190, 0.0
    %v223 = vadd.f32 %v221, %v222
    %v224 = vsel %vm216, %v198, 0.0
    %v225 = vadd.f32 %v223, %v224
    %v226 = vsel %vm216, %v206, 0.0
    %v227 = vadd.f32 %v225, %v226
    %v228 = vsel %vm216, %v205, 0.0
    %v229 = vadd.f32 %v227, %v228
    %v230 = vsel %vm216, %v207, 0.0
    %v231 = vadd.f32 %v229, %v230
    %232 = vadd.xlane.f32.xlu0 %v231
    %v233 = vpop.xlane.xlu0 %232
    %v234 = vrsqrt.pop %v233
    %v235 = vmul.f32 %v233, %v234
    %vm236 = vcmp.eq.f32.partialorder %v233, inf
    %v237 = vsel %vm236, %v233, %v235
    %vm238 = vcmp.eq.f32.partialorder %v233, 0.0
    %v239 = vand.u32 %v233, 2147483648
    %v240 = vsel %vm238, %v239, %v237
    %v241 = vmax.f32 %v240, 1e-12
    %v242 = vrcp.pop %v241
    %v243 = vmul.f32 %v242, 0.5
    %v246 = vunpack.c.l.s4 269488144
    %v247 = vunpack.c.0.s8 %v246
    %v248 = vlaneseq
    %v249 = vshrl.u32 %v248, 7
    %v250 = vsub.s32 %v247, %v249
    %v251 = vrot.slane %v243, %v250
    %v253 = vmul.f32 %v168, %v251
    %v254 = vmul.f32 %v169, %v251
    %v255 = vadd.f32 %v21, %v253
    %v256 = vadd.f32 %v22, %v254
    %v258 = vlaneseq
    %v259 = vshrl.u32 %v258, 7
    %v260 = vsub.s32 0, %v259
    %v261 = vrot.slane %v151, %v260
    %v265 = vcombine.high %v255, %v255
    %v267 = vunpack.c.l.s4 1983009808
    %v268 = vunpack.c.0.s8 %v267
    %v269 = vlaneseq
    %v270 = vshrl.u32 %v269, 7
    %v271 = vsub.s32 %v268, %v270
    %v272 = vrot.slane %v255, %v271
    %v274 = vunpack.c.l.s4 1983009808
    %v275 = vunpack.c.0.s8 %v274
    %v276 = vlaneseq
    %v277 = vshrl.u32 %v276, 7
    %v278 = vsub.s32 %v275, %v277
    %v279 = vrot.slane %v265, %v278
    %v280 = vcombine.high %v272, %v272
    %v281 = vcombine.high %v279, %v279
    %v282 = vcombine.high %v256, %v256
    %v284 = vunpack.c.l.s4 1983009808
    %v285 = vunpack.c.0.s8 %v284
    %v286 = vlaneseq
    %v287 = vshrl.u32 %v286, 7
    %v288 = vsub.s32 %v285, %v287
    %v289 = vrot.slane %v256, %v288
    %v291 = vunpack.c.l.s4 1983009808
    %v292 = vunpack.c.0.s8 %v291
    %v293 = vlaneseq
    %v294 = vshrl.u32 %v293, 7
    %v295 = vsub.s32 %v292, %v294
    %v296 = vrot.slane %v282, %v295
    %v297 = vcombine.high %v289, %v289
    %v298 = vcombine.high %v296, %v296
    %307 = vmatprep.subr.mxu0 0.0
    %308 = vmatpush1.msra.mxu0 %v23
    %309 = vmatprep.subr.mxu0 0.0
    %310 = vmatpush1.msra.mxu0 %v24
    %311 = vmatprep.subr.mxu0 0.0
    %312 = vmatpush1.msra.mxu0 %v25
    %313 = vmatprep.subr.mxu0 0.0
    %314 = vmatpush1.msra.mxu0 %v26
    %315 = vmatprep.subr.mxu0 0.0
    %316 = vmatpush1.msra.mxu0 %v27
    %317 = vmatprep.subr.mxu0 0.0
    %318 = vmatpush1.msra.mxu0 %v28
    %319 = vmatprep.subr.mxu0 0.0
    %320 = vmatpush1.msra.mxu0 %v29
    %321 = vmatprep.subr.mxu0 0.0
    %322 = vmatpush1.msra.mxu0 %v30
    %323 = vmatprep.subr.mxu0 0.0
    %324 = vmatpush1.msra.mxu0 %v31
    %325 = vmatprep.subr.mxu0 0.0
    %326 = vmatpush1.msra.mxu0 %v32
    %327 = vmatprep.subr.mxu0 0.0
    %328 = vmatpush1.msra.mxu0 %v33
    %329 = vmatprep.subr.mxu0 0.0
    %330 = vmatpush1.msra.mxu0 %v34
    %331 = vmatprep.subr.mxu0 0.0
    %332 = vmatpush1.msra.mxu0 %v35
    %333 = vmatprep.subr.mxu0 0.0
    %334 = vmatpush1.msra.mxu0 %v36
    %335 = vmatprep.subr.mxu0 0.0
    %336 = vmatpush1.msra.mxu0 %v37
    %337 = vmatprep.subr.mxu0 0.0
    %338 = vmatpush1.msra.mxu0 %v38
    %339 = vmatprep.subr.mxu0 0.0
    %340 = vmatpush1.msra.mxu0 %v39
    %341 = vmatprep.subr.mxu0 0.0
    %342 = vmatpush1.msra.mxu0 %v40
    %343 = vmatprep.subr.mxu0 0.0
    %344 = vmatpush1.msra.mxu0 %v41
    %345 = vmatprep.subr.mxu0 0.0
    %346 = vmatpush1.msra.mxu0 %v42
    %347 = vmatprep.subr.mxu0 0.0
    %348 = vmatpush1.msra.mxu0 %v43
    %349 = vmatprep.subr.mxu0 0.0
    %350 = vmatpush1.msra.mxu0 %v44
    %351 = vmatprep.subr.mxu0 0.0
    %352 = vmatpush1.msra.mxu0 %v45
    %353 = vmatprep.subr.mxu0 0.0
    %354 = vmatpush1.msra.mxu0 %v46
    %355 = vmatprep.subr.mxu0 0.0
    %356 = vmatpush1.msra.mxu0 %v47
    %357 = vmatprep.subr.mxu0 0.0
    %358 = vmatpush1.msra.mxu0 %v48
    %359 = vmatprep.subr.mxu0 0.0
    %360 = vmatpush1.msra.mxu0 %v49
    %361 = vmatprep.subr.mxu0 0.0
    %362 = vmatpush1.msra.mxu0 %v50
    %363 = vmatprep.subr.mxu0 0.0
    %364 = vmatpush1.msra.mxu0 %v51
    %365 = vmatprep.subr.mxu0 0.0
    %366 = vmatpush1.msra.mxu0 %v52
    %367 = vmatprep.subr.mxu0 0.0
    %368 = vmatpush1.msra.mxu0 %v53
    %369 = vmatprep.subr.mxu0 0.0
    %370 = vmatpush1.msra.mxu0 %v54
    %371 = vmatprep.mubr.f32.mxu0 %v280
    %372 = vmatmul.mubr.f32.gmra.mrb[0].mxu0 %v272
    %v373 = vpop.f32.mrb[0].mxu0
    %v374 = vadd.f32 %v261, %v373
    %v375 = vpop.f32.mrb[0].mxu0
    %376 = vdwg.mxu0
    %377 = vmatprep.subr.mxu0 0.0
    %378 = vmatpush1.msra.mxu0 %v55
    %379 = vmatprep.subr.mxu0 0.0
    %380 = vmatpush1.msra.mxu0 %v56
    %381 = vmatprep.subr.mxu0 0.0
    %382 = vmatpush1.msra.mxu0 %v57
    %383 = vmatprep.subr.mxu0 0.0
    %384 = vmatpush1.msra.mxu0 %v58
    %385 = vmatprep.subr.mxu0 0.0
    %386 = vmatpush1.msra.mxu0 %v59
    %387 = vmatprep.subr.mxu0 0.0
    %388 = vmatpush1.msra.mxu0 %v60
    %389 = vmatprep.subr.mxu0 0.0
    %390 = vmatpush1.msra.mxu0 %v61
    %391 = vmatprep.subr.mxu0 0.0
    %392 = vmatpush1.msra.mxu0 %v62
    %393 = vmatprep.subr.mxu0 0.0
    %394 = vmatpush1.msra.mxu0 %v63
    %395 = vmatprep.subr.mxu0 0.0
    %396 = vmatpush1.msra.mxu0 %v64
    %397 = vmatprep.subr.mxu0 0.0
    %398 = vmatpush1.msra.mxu0 %v65
    %399 = vmatprep.subr.mxu0 0.0
    %400 = vmatpush1.msra.mxu0 %v66
    %401 = vmatprep.subr.mxu0 0.0
    %402 = vmatpush1.msra.mxu0 %v67
    %403 = vmatprep.subr.mxu0 0.0
    %404 = vmatpush1.msra.mxu0 %v68
    %405 = vmatprep.subr.mxu0 0.0
    %406 = vmatpush1.msra.mxu0 %v69
    %407 = vmatprep.subr.mxu0 0.0
    %408 = vmatpush1.msra.mxu0 %v70
    %409 = vmatprep.subr.mxu0 0.0
    %410 = vmatpush1.msra.mxu0 %v71
    %411 = vmatprep.subr.mxu0 0.0
    %412 = vmatpush1.msra.mxu0 %v72
    %413 = vmatprep.subr.mxu0 0.0
    %414 = vmatpush1.msra.mxu0 %v73
    %415 = vmatprep.subr.mxu0 0.0
    %416 = vmatpush1.msra.mxu0 %v74
    %417 = vmatprep.subr.mxu0 0.0
    %418 = vmatpush1.msra.mxu0 %v75
    %419 = vmatprep.subr.mxu0 0.0
    %420 = vmatpush1.msra.mxu0 %v76
    %421 = vmatprep.subr.mxu0 0.0
    %422 = vmatpush1.msra.mxu0 %v77
    %423 = vmatprep.subr.mxu0 0.0
    %424 = vmatpush1.msra.mxu0 %v78
    %425 = vmatprep.subr.mxu0 0.0
    %426 = vmatpush1.msra.mxu0 %v79
    %427 = vmatprep.subr.mxu0 0.0
    %428 = vmatpush1.msra.mxu0 %v80
    %429 = vmatprep.subr.mxu0 0.0
    %430 = vmatpush1.msra.mxu0 %v81
    %431 = vmatprep.subr.mxu0 0.0
    %432 = vmatpush1.msra.mxu0 %v82
    %433 = vmatprep.subr.mxu0 0.0
    %434 = vmatpush1.msra.mxu0 %v83
    %435 = vmatprep.subr.mxu0 0.0
    %436 = vmatpush1.msra.mxu0 %v84
    %437 = vmatprep.subr.mxu0 0.0
    %438 = vmatpush1.msra.mxu0 %v85
    %439 = vmatprep.subr.mxu0 0.0
    %440 = vmatpush1.msra.mxu0 %v86
    %441 = vmatprep.mubr.f32.mxu0 %v281
    %442 = vmatmul.mubr.f32.gmra.mrb[0].mxu0 %v279
    %v443 = vpop.f32.mrb[0].mxu0
    %v444 = vadd.f32 %v374, %v443
    %v445 = vpop.f32.mrb[0].mxu0
    %446 = vdwg.mxu0
    %447 = vmatprep.subr.mxu0 0.0
    %448 = vmatpush1.msra.mxu0 %v87
    %449 = vmatprep.subr.mxu0 0.0
    %450 = vmatpush1.msra.mxu0 %v88
    %451 = vmatprep.subr.mxu0 0.0
    %452 = vmatpush1.msra.mxu0 %v89
    %453 = vmatprep.subr.mxu0 0.0
    %454 = vmatpush1.msra.mxu0 %v90
    %455 = vmatprep.subr.mxu0 0.0
    %456 = vmatpush1.msra.mxu0 %v91
    %457 = vmatprep.subr.mxu0 0.0
    %458 = vmatpush1.msra.mxu0 %v92
    %459 = vmatprep.subr.mxu0 0.0
    %460 = vmatpush1.msra.mxu0 %v93
    %461 = vmatprep.subr.mxu0 0.0
    %462 = vmatpush1.msra.mxu0 %v94
    %463 = vmatprep.subr.mxu0 0.0
    %464 = vmatpush1.msra.mxu0 %v95
    %465 = vmatprep.subr.mxu0 0.0
    %466 = vmatpush1.msra.mxu0 %v96
    %467 = vmatprep.subr.mxu0 0.0
    %468 = vmatpush1.msra.mxu0 %v97
    %469 = vmatprep.subr.mxu0 0.0
    %470 = vmatpush1.msra.mxu0 %v98
    %471 = vmatprep.subr.mxu0 0.0
    %472 = vmatpush1.msra.mxu0 %v99
    %473 = vmatprep.subr.mxu0 0.0
    %474 = vmatpush1.msra.mxu0 %v100
    %475 = vmatprep.subr.mxu0 0.0
    %476 = vmatpush1.msra.mxu0 %v101
    %477 = vmatprep.subr.mxu0 0.0
    %478 = vmatpush1.msra.mxu0 %v102
    %479 = vmatprep.subr.mxu0 0.0
    %480 = vmatpush1.msra.mxu0 %v103
    %481 = vmatprep.subr.mxu0 0.0
    %482 = vmatpush1.msra.mxu0 %v104
    %483 = vmatprep.subr.mxu0 0.0
    %484 = vmatpush1.msra.mxu0 %v105
    %485 = vmatprep.subr.mxu0 0.0
    %486 = vmatpush1.msra.mxu0 %v106
    %487 = vmatprep.subr.mxu0 0.0
    %488 = vmatpush1.msra.mxu0 %v107
    %489 = vmatprep.subr.mxu0 0.0
    %490 = vmatpush1.msra.mxu0 %v108
    %491 = vmatprep.subr.mxu0 0.0
    %492 = vmatpush1.msra.mxu0 %v109
    %493 = vmatprep.subr.mxu0 0.0
    %494 = vmatpush1.msra.mxu0 %v110
    %495 = vmatprep.subr.mxu0 0.0
    %496 = vmatpush1.msra.mxu0 %v111
    %497 = vmatprep.subr.mxu0 0.0
    %498 = vmatpush1.msra.mxu0 %v112
    %499 = vmatprep.subr.mxu0 0.0
    %500 = vmatpush1.msra.mxu0 %v113
    %501 = vmatprep.subr.mxu0 0.0
    %502 = vmatpush1.msra.mxu0 %v114
    %503 = vmatprep.subr.mxu0 0.0
    %504 = vmatpush1.msra.mxu0 %v115
    %505 = vmatprep.subr.mxu0 0.0
    %506 = vmatpush1.msra.mxu0 %v116
    %507 = vmatprep.subr.mxu0 0.0
    %508 = vmatpush1.msra.mxu0 %v117
    %509 = vmatprep.subr.mxu0 0.0
    %510 = vmatpush1.msra.mxu0 %v118
    %511 = vmatprep.mubr.f32.mxu0 %v297
    %512 = vmatmul.mubr.f32.gmra.mrb[0].mxu0 %v289
    %v513 = vpop.f32.mrb[0].mxu0
    %v514 = vadd.f32 %v444, %v513
    %v515 = vpop.f32.mrb[0].mxu0
    %516 = vdwg.mxu0
    %517 = vmatprep.subr.mxu0 0.0
    %518 = vmatpush1.msra.mxu0 %v119
    %519 = vmatprep.subr.mxu0 0.0
    %520 = vmatpush1.msra.mxu0 %v120
    %521 = vmatprep.subr.mxu0 0.0
    %522 = vmatpush1.msra.mxu0 %v121
    %523 = vmatprep.subr.mxu0 0.0
    %524 = vmatpush1.msra.mxu0 %v122
    %525 = vmatprep.subr.mxu0 0.0
    %526 = vmatpush1.msra.mxu0 %v123
    %527 = vmatprep.subr.mxu0 0.0
    %528 = vmatpush1.msra.mxu0 %v124
    %529 = vmatprep.subr.mxu0 0.0
    %530 = vmatpush1.msra.mxu0 %v125
    %531 = vmatprep.subr.mxu0 0.0
    %532 = vmatpush1.msra.mxu0 %v126
    %533 = vmatprep.subr.mxu0 0.0
    %534 = vmatpush1.msra.mxu0 %v127
    %535 = vmatprep.subr.mxu0 0.0
    %536 = vmatpush1.msra.mxu0 %v128
    %537 = vmatprep.subr.mxu0 0.0
    %538 = vmatpush1.msra.mxu0 %v129
    %539 = vmatprep.subr.mxu0 0.0
    %540 = vmatpush1.msra.mxu0 %v130
    %541 = vmatprep.subr.mxu0 0.0
    %542 = vmatpush1.msra.mxu0 %v131
    %543 = vmatprep.subr.mxu0 0.0
    %544 = vmatpush1.msra.mxu0 %v132
    %545 = vmatprep.subr.mxu0 0.0
    %546 = vmatpush1.msra.mxu0 %v133
    %547 = vmatprep.subr.mxu0 0.0
    %548 = vmatpush1.msra.mxu0 %v134
    %549 = vmatprep.subr.mxu0 0.0
    %550 = vmatpush1.msra.mxu0 %v135
    %551 = vmatprep.subr.mxu0 0.0
    %552 = vmatpush1.msra.mxu0 %v136
    %553 = vmatprep.subr.mxu0 0.0
    %554 = vmatpush1.msra.mxu0 %v137
    %555 = vmatprep.subr.mxu0 0.0
    %556 = vmatpush1.msra.mxu0 %v138
    %557 = vmatprep.subr.mxu0 0.0
    %558 = vmatpush1.msra.mxu0 %v139
    %559 = vmatprep.subr.mxu0 0.0
    %560 = vmatpush1.msra.mxu0 %v140
    %561 = vmatprep.subr.mxu0 0.0
    %562 = vmatpush1.msra.mxu0 %v141
    %563 = vmatprep.subr.mxu0 0.0
    %564 = vmatpush1.msra.mxu0 %v142
    %565 = vmatprep.subr.mxu0 0.0
    %566 = vmatpush1.msra.mxu0 %v143
    %567 = vmatprep.subr.mxu0 0.0
    %568 = vmatpush1.msra.mxu0 %v144
    %569 = vmatprep.subr.mxu0 0.0
    %570 = vmatpush1.msra.mxu0 %v145
    %571 = vmatprep.subr.mxu0 0.0
    %572 = vmatpush1.msra.mxu0 %v146
    %573 = vmatprep.subr.mxu0 0.0
    %574 = vmatpush1.msra.mxu0 %v147
    %575 = vmatprep.subr.mxu0 0.0
    %576 = vmatpush1.msra.mxu0 %v148
    %577 = vmatprep.subr.mxu0 0.0
    %578 = vmatpush1.msra.mxu0 %v149
    %579 = vmatprep.subr.mxu0 0.0
    %580 = vmatpush1.msra.mxu0 %v150
    %581 = vmatprep.mubr.f32.mxu0 %v298
    %582 = vmatmul.mubr.f32.gmra.mrb[0].mxu0 %v296
    %v583 = vpop.f32.mrb[0].mxu0
    %v584 = vadd.f32 %v514, %v583
    %v585 = vpop.f32.mrb[0].mxu0
    %586 = vdwg.mxu0
    %v587 = vsel %vm153, %v584, -inf
    %588 = vmax.xlane.f32.xlu0 %v587
    %v589 = vpop.xlane.xlu0 %588
    %v590 = vsub.f32 %v584, %v589
    %v591 = vmul.f32 %v590, 1.442695
    %v592 = vpow.pop %v591
    %v593 = vsel %vm153, %v592, 0.0
    %594 = vadd.xlane.f32.xlu0 %v593
    %v595 = vpop.xlane.xlu0 %594
    %v596 = vrcp.pop %v595
    %v597 = vmul.f32 %v592, %v596
    %v598 = vsub.f32 %v597, %v167
    %v599 = vmul.f32 %v598, 0.5
    %vm600 = vcmask 64512
    %v602 = vsel %vm600, %v599, 0
    %v605 = vsel %vm600, %v23, 0
    %v608 = vsel %vm600, %v24, 0
    %v611 = vsel %vm600, %v25, 0
    %v614 = vsel %vm600, %v26, 0
    %v617 = vsel %vm600, %v27, 0
    %v620 = vsel %vm600, %v28, 0
    %v623 = vsel %vm600, %v29, 0
    %v626 = vsel %vm600, %v30, 0
    %v629 = vsel %vm600, %v31, 0
    %v632 = vsel %vm600, %v32, 0
    %v635 = vsel %vm600, %v33, 0
    %v638 = vsel %vm600, %v34, 0
    %v641 = vsel %vm600, %v35, 0
    %v644 = vsel %vm600, %v36, 0
    %v647 = vsel %vm600, %v37, 0
    %v650 = vsel %vm600, %v38, 0
    %v653 = vsel %vm600, %v39, 0
    %v656 = vsel %vm600, %v40, 0
    %v659 = vsel %vm600, %v41, 0
    %v662 = vsel %vm600, %v42, 0
    %v665 = vsel %vm600, %v43, 0
    %v668 = vsel %vm600, %v44, 0
    %v671 = vsel %vm600, %v45, 0
    %v674 = vsel %vm600, %v46, 0
    %v677 = vsel %vm600, %v47, 0
    %v680 = vsel %vm600, %v48, 0
    %v683 = vsel %vm600, %v49, 0
    %v686 = vsel %vm600, %v50, 0
    %v689 = vsel %vm600, %v51, 0
    %v692 = vsel %vm600, %v52, 0
    %v695 = vsel %vm600, %v53, 0
    %v698 = vsel %vm600, %v54, 0
    %v701 = vsel %vm600, %v55, 0
    %v704 = vsel %vm600, %v56, 0
    %v707 = vsel %vm600, %v57, 0
    %v710 = vsel %vm600, %v58, 0
    %v713 = vsel %vm600, %v59, 0
    %v716 = vsel %vm600, %v60, 0
    %v719 = vsel %vm600, %v61, 0
    %v722 = vsel %vm600, %v62, 0
    %v725 = vsel %vm600, %v63, 0
    %v728 = vsel %vm600, %v64, 0
    %v731 = vsel %vm600, %v65, 0
    %v734 = vsel %vm600, %v66, 0
    %v737 = vsel %vm600, %v67, 0
    %v740 = vsel %vm600, %v68, 0
    %v743 = vsel %vm600, %v69, 0
    %v746 = vsel %vm600, %v70, 0
    %v749 = vsel %vm600, %v71, 0
    %v752 = vsel %vm600, %v72, 0
    %v755 = vsel %vm600, %v73, 0
    %v758 = vsel %vm600, %v74, 0
    %v761 = vsel %vm600, %v75, 0
    %v764 = vsel %vm600, %v76, 0
    %v767 = vsel %vm600, %v77, 0
    %v770 = vsel %vm600, %v78, 0
    %v773 = vsel %vm600, %v79, 0
    %v776 = vsel %vm600, %v80, 0
    %v779 = vsel %vm600, %v81, 0
    %v782 = vsel %vm600, %v82, 0
    %v785 = vsel %vm600, %v83, 0
    %v788 = vsel %vm600, %v84, 0
    %v791 = vsel %vm600, %v85, 0
    %v794 = vsel %vm600, %v86, 0
    %v797 = vsel %vm600, %v87, 0
    %v800 = vsel %vm600, %v88, 0
    %v803 = vsel %vm600, %v89, 0
    %v806 = vsel %vm600, %v90, 0
    %v809 = vsel %vm600, %v91, 0
    %v812 = vsel %vm600, %v92, 0
    %v815 = vsel %vm600, %v93, 0
    %v818 = vsel %vm600, %v94, 0
    %v821 = vsel %vm600, %v95, 0
    %v824 = vsel %vm600, %v96, 0
    %v827 = vsel %vm600, %v97, 0
    %v830 = vsel %vm600, %v98, 0
    %v833 = vsel %vm600, %v99, 0
    %v836 = vsel %vm600, %v100, 0
    %v839 = vsel %vm600, %v101, 0
    %v842 = vsel %vm600, %v102, 0
    %v845 = vsel %vm600, %v103, 0
    %v848 = vsel %vm600, %v104, 0
    %v851 = vsel %vm600, %v105, 0
    %v854 = vsel %vm600, %v106, 0
    %v857 = vsel %vm600, %v107, 0
    %v860 = vsel %vm600, %v108, 0
    %v863 = vsel %vm600, %v109, 0
    %v866 = vsel %vm600, %v110, 0
    %v869 = vsel %vm600, %v111, 0
    %v872 = vsel %vm600, %v112, 0
    %v875 = vsel %vm600, %v113, 0
    %v878 = vsel %vm600, %v114, 0
    %v881 = vsel %vm600, %v115, 0
    %v884 = vsel %vm600, %v116, 0
    %v887 = vsel %vm600, %v117, 0
    %v890 = vsel %vm600, %v118, 0
    %v893 = vsel %vm600, %v119, 0
    %v896 = vsel %vm600, %v120, 0
    %v899 = vsel %vm600, %v121, 0
    %v902 = vsel %vm600, %v122, 0
    %v905 = vsel %vm600, %v123, 0
    %v908 = vsel %vm600, %v124, 0
    %v911 = vsel %vm600, %v125, 0
    %v914 = vsel %vm600, %v126, 0
    %v917 = vsel %vm600, %v127, 0
    %v920 = vsel %vm600, %v128, 0
    %v923 = vsel %vm600, %v129, 0
    %v926 = vsel %vm600, %v130, 0
    %v929 = vsel %vm600, %v131, 0
    %v932 = vsel %vm600, %v132, 0
    %v935 = vsel %vm600, %v133, 0
    %v938 = vsel %vm600, %v134, 0
    %v941 = vsel %vm600, %v135, 0
    %v944 = vsel %vm600, %v136, 0
    %v947 = vsel %vm600, %v137, 0
    %v950 = vsel %vm600, %v138, 0
    %v953 = vsel %vm600, %v139, 0
    %v956 = vsel %vm600, %v140, 0
    %v959 = vsel %vm600, %v141, 0
    %v962 = vsel %vm600, %v142, 0
    %v965 = vsel %vm600, %v143, 0
    %v968 = vsel %vm600, %v144, 0
    %v971 = vsel %vm600, %v145, 0
    %v974 = vsel %vm600, %v146, 0
    %v977 = vsel %vm600, %v147, 0
    %v980 = vsel %vm600, %v148, 0
    %v983 = vsel %vm600, %v149, 0
    %v986 = vsel %vm600, %v150, 0
    %988 = vmatprep.subr.mxu0 0.0
    %989 = vmatpush1.xpose.msra.mxu0 %v605
    %990 = vmatprep.subr.mxu0 0.0
    %991 = vmatpush1.xpose.msra.mxu0 %v608
    %992 = vmatprep.subr.mxu0 0.0
    %993 = vmatpush1.xpose.msra.mxu0 %v611
    %994 = vmatprep.subr.mxu0 0.0
    %995 = vmatpush1.xpose.msra.mxu0 %v614
    %996 = vmatprep.subr.mxu0 0.0
    %997 = vmatpush1.xpose.msra.mxu0 %v617
    %998 = vmatprep.subr.mxu0 0.0
    %999 = vmatpush1.xpose.msra.mxu0 %v620
    %1000 = vmatprep.subr.mxu0 0.0
    %1001 = vmatpush1.xpose.msra.mxu0 %v623
    %1002 = vmatprep.subr.mxu0 0.0
    %1003 = vmatpush1.xpose.msra.mxu0 %v626
    %1004 = vmatprep.subr.mxu0 0.0
    %1005 = vmatpush1.xpose.msra.mxu0 %v629
    %1006 = vmatprep.subr.mxu0 0.0
    %1007 = vmatpush1.xpose.msra.mxu0 %v632
    %1008 = vmatprep.subr.mxu0 0.0
    %1009 = vmatpush1.xpose.msra.mxu0 %v635
    %1010 = vmatprep.subr.mxu0 0.0
    %1011 = vmatpush1.xpose.msra.mxu0 %v638
    %1012 = vmatprep.subr.mxu0 0.0
    %1013 = vmatpush1.xpose.msra.mxu0 %v641
    %1014 = vmatprep.subr.mxu0 0.0
    %1015 = vmatpush1.xpose.msra.mxu0 %v644
    %1016 = vmatprep.subr.mxu0 0.0
    %1017 = vmatpush1.xpose.msra.mxu0 %v647
    %1018 = vmatprep.subr.mxu0 0.0
    %1019 = vmatpush1.xpose.msra.mxu0 %v650
    %1020 = vmatprep.subr.mxu0 0.0
    %1021 = vmatpush1.xpose.msra.mxu0 %v653
    %1022 = vmatprep.subr.mxu0 0.0
    %1023 = vmatpush1.xpose.msra.mxu0 %v656
    %1024 = vmatprep.subr.mxu0 0.0
    %1025 = vmatpush1.xpose.msra.mxu0 %v659
    %1026 = vmatprep.subr.mxu0 0.0
    %1027 = vmatpush1.xpose.msra.mxu0 %v662
    %1028 = vmatprep.subr.mxu0 0.0
    %1029 = vmatpush1.xpose.msra.mxu0 %v665
    %1030 = vmatprep.subr.mxu0 0.0
    %1031 = vmatpush1.xpose.msra.mxu0 %v668
    %1032 = vmatprep.subr.mxu0 0.0
    %1033 = vmatpush1.xpose.msra.mxu0 %v671
    %1034 = vmatprep.subr.mxu0 0.0
    %1035 = vmatpush1.xpose.msra.mxu0 %v674
    %1036 = vmatprep.subr.mxu0 0.0
    %1037 = vmatpush1.xpose.msra.mxu0 %v677
    %1038 = vmatprep.subr.mxu0 0.0
    %1039 = vmatpush1.xpose.msra.mxu0 %v680
    %1040 = vmatprep.subr.mxu0 0.0
    %1041 = vmatpush1.xpose.msra.mxu0 %v683
    %1042 = vmatprep.subr.mxu0 0.0
    %1043 = vmatpush1.xpose.msra.mxu0 %v686
    %1044 = vmatprep.subr.mxu0 0.0
    %1045 = vmatpush1.xpose.msra.mxu0 %v689
    %1046 = vmatprep.subr.mxu0 0.0
    %1047 = vmatpush1.xpose.msra.mxu0 %v692
    %1048 = vmatprep.subr.mxu0 0.0
    %1049 = vmatpush1.xpose.msra.mxu0 %v695
    %1050 = vmatprep.subr.mxu0 0.0
    %1051 = vmatpush1.xpose.msra.mxu0 %v698
    %1052 = vmatprep.mubr.f32.mxu0 0.0
    %1053 = vmatmul.mubr.f32.gmra.mrb[0].mxu0 %v602
    %v1054 = vpop.f32.mrb[0].mxu0
    %v1055 = vadd.f32 0.0, %v1054
    %v1056 = vpop.f32.mrb[0].mxu0
    %v1057 = vadd.f32 0.0, %v1056
    %1058 = vdwg.mxu0
    %1059 = vmatprep.subr.mxu0 0.0
    %1060 = vmatpush1.xpose.msra.mxu0 %v701
    %1061 = vmatprep.subr.mxu0 0.0
    %1062 = vmatpush1.xpose.msra.mxu0 %v704
    %1063 = vmatprep.subr.mxu0 0.0
    %1064 = vmatpush1.xpose.msra.mxu0 %v707
    %1065 = vmatprep.subr.mxu0 0.0
    %1066 = vmatpush1.xpose.msra.mxu0 %v710
    %1067 = vmatprep.subr.mxu0 0.0
    %1068 = vmatpush1.xpose.msra.mxu0 %v713
    %1069 = vmatprep.subr.mxu0 0.0
    %1070 = vmatpush1.xpose.msra.mxu0 %v716
    %1071 = vmatprep.subr.mxu0 0.0
    %1072 = vmatpush1.xpose.msra.mxu0 %v719
    %1073 = vmatprep.subr.mxu0 0.0
    %1074 = vmatpush1.xpose.msra.mxu0 %v722
    %1075 = vmatprep.subr.mxu0 0.0
    %1076 = vmatpush1.xpose.msra.mxu0 %v725
    %1077 = vmatprep.subr.mxu0 0.0
    %1078 = vmatpush1.xpose.msra.mxu0 %v728
    %1079 = vmatprep.subr.mxu0 0.0
    %1080 = vmatpush1.xpose.msra.mxu0 %v731
    %1081 = vmatprep.subr.mxu0 0.0
    %1082 = vmatpush1.xpose.msra.mxu0 %v734
    %1083 = vmatprep.subr.mxu0 0.0
    %1084 = vmatpush1.xpose.msra.mxu0 %v737
    %1085 = vmatprep.subr.mxu0 0.0
    %1086 = vmatpush1.xpose.msra.mxu0 %v740
    %1087 = vmatprep.subr.mxu0 0.0
    %1088 = vmatpush1.xpose.msra.mxu0 %v743
    %1089 = vmatprep.subr.mxu0 0.0
    %1090 = vmatpush1.xpose.msra.mxu0 %v746
    %1091 = vmatprep.subr.mxu0 0.0
    %1092 = vmatpush1.xpose.msra.mxu0 %v749
    %1093 = vmatprep.subr.mxu0 0.0
    %1094 = vmatpush1.xpose.msra.mxu0 %v752
    %1095 = vmatprep.subr.mxu0 0.0
    %1096 = vmatpush1.xpose.msra.mxu0 %v755
    %1097 = vmatprep.subr.mxu0 0.0
    %1098 = vmatpush1.xpose.msra.mxu0 %v758
    %1099 = vmatprep.subr.mxu0 0.0
    %1100 = vmatpush1.xpose.msra.mxu0 %v761
    %1101 = vmatprep.subr.mxu0 0.0
    %1102 = vmatpush1.xpose.msra.mxu0 %v764
    %1103 = vmatprep.subr.mxu0 0.0
    %1104 = vmatpush1.xpose.msra.mxu0 %v767
    %1105 = vmatprep.subr.mxu0 0.0
    %1106 = vmatpush1.xpose.msra.mxu0 %v770
    %1107 = vmatprep.subr.mxu0 0.0
    %1108 = vmatpush1.xpose.msra.mxu0 %v773
    %1109 = vmatprep.subr.mxu0 0.0
    %1110 = vmatpush1.xpose.msra.mxu0 %v776
    %1111 = vmatprep.subr.mxu0 0.0
    %1112 = vmatpush1.xpose.msra.mxu0 %v779
    %1113 = vmatprep.subr.mxu0 0.0
    %1114 = vmatpush1.xpose.msra.mxu0 %v782
    %1115 = vmatprep.subr.mxu0 0.0
    %1116 = vmatpush1.xpose.msra.mxu0 %v785
    %1117 = vmatprep.subr.mxu0 0.0
    %1118 = vmatpush1.xpose.msra.mxu0 %v788
    %1119 = vmatprep.subr.mxu0 0.0
    %1120 = vmatpush1.xpose.msra.mxu0 %v791
    %1121 = vmatprep.subr.mxu0 0.0
    %1122 = vmatpush1.xpose.msra.mxu0 %v794
    %1123 = vmatprep.mubr.f32.mxu0 0.0
    %1124 = vmatmul.mubr.f32.gmra.mrb[0].mxu0 %v602
    %v1125 = vpop.f32.mrb[0].mxu0
    %v1126 = vadd.f32 0.0, %v1125
    %v1127 = vpop.f32.mrb[0].mxu0
    %v1128 = vadd.f32 0.0, %v1127
    %1129 = vdwg.mxu0
    %1130 = vmatprep.subr.mxu0 0.0
    %1131 = vmatpush1.xpose.msra.mxu0 %v797
    %1132 = vmatprep.subr.mxu0 0.0
    %1133 = vmatpush1.xpose.msra.mxu0 %v800
    %1134 = vmatprep.subr.mxu0 0.0
    %1135 = vmatpush1.xpose.msra.mxu0 %v803
    %1136 = vmatprep.subr.mxu0 0.0
    %1137 = vmatpush1.xpose.msra.mxu0 %v806
    %1138 = vmatprep.subr.mxu0 0.0
    %1139 = vmatpush1.xpose.msra.mxu0 %v809
    %1140 = vmatprep.subr.mxu0 0.0
    %1141 = vmatpush1.xpose.msra.mxu0 %v812
    %1142 = vmatprep.subr.mxu0 0.0
    %1143 = vmatpush1.xpose.msra.mxu0 %v815
    %1144 = vmatprep.subr.mxu0 0.0
    %1145 = vmatpush1.xpose.msra.mxu0 %v818
    %1146 = vmatprep.subr.mxu0 0.0
    %1147 = vmatpush1.xpose.msra.mxu0 %v821
    %1148 = vmatprep.subr.mxu0 0.0
    %1149 = vmatpush1.xpose.msra.mxu0 %v824
    %1150 = vmatprep.subr.mxu0 0.0
    %1151 = vmatpush1.xpose.msra.mxu0 %v827
    %1152 = vmatprep.subr.mxu0 0.0
    %1153 = vmatpush1.xpose.msra.mxu0 %v830
    %1154 = vmatprep.subr.mxu0 0.0
    %1155 = vmatpush1.xpose.msra.mxu0 %v833
    %1156 = vmatprep.subr.mxu0 0.0
    %1157 = vmatpush1.xpose.msra.mxu0 %v836
    %1158 = vmatprep.subr.mxu0 0.0
    %1159 = vmatpush1.xpose.msra.mxu0 %v839
    %1160 = vmatprep.subr.mxu0 0.0
    %1161 = vmatpush1.xpose.msra.mxu0 %v842
    %1162 = vmatprep.subr.mxu0 0.0
    %1163 = vmatpush1.xpose.msra.mxu0 %v845
    %1164 = vmatprep.subr.mxu0 0.0
    %1165 = vmatpush1.xpose.msra.mxu0 %v848
    %1166 = vmatprep.subr.mxu0 0.0
    %1167 = vmatpush1.xpose.msra.mxu0 %v851
    %1168 = vmatprep.subr.mxu0 0.0
    %1169 = vmatpush1.xpose.msra.mxu0 %v854
    %1170 = vmatprep.subr.mxu0 0.0
    %1171 = vmatpush1.xpose.msra.mxu0 %v857
    %1172 = vmatprep.subr.mxu0 0.0
    %1173 = vmatpush1.xpose.msra.mxu0 %v860
    %1174 = vmatprep.subr.mxu0 0.0
    %1175 = vmatpush1.xpose.msra.mxu0 %v863
    %1176 = vmatprep.subr.mxu0 0.0
    %1177 = vmatpush1.xpose.msra.mxu0 %v866
    %1178 = vmatprep.subr.mxu0 0.0
    %1179 = vmatpush1.xpose.msra.mxu0 %v869
    %1180 = vmatprep.subr.mxu0 0.0
    %1181 = vmatpush1.xpose.msra.mxu0 %v872
    %1182 = vmatprep.subr.mxu0 0.0
    %1183 = vmatpush1.xpose.msra.mxu0 %v875
    %1184 = vmatprep.subr.mxu0 0.0
    %1185 = vmatpush1.xpose.msra.mxu0 %v878
    %1186 = vmatprep.subr.mxu0 0.0
    %1187 = vmatpush1.xpose.msra.mxu0 %v881
    %1188 = vmatprep.subr.mxu0 0.0
    %1189 = vmatpush1.xpose.msra.mxu0 %v884
    %1190 = vmatprep.subr.mxu0 0.0
    %1191 = vmatpush1.xpose.msra.mxu0 %v887
    %1192 = vmatprep.subr.mxu0 0.0
    %1193 = vmatpush1.xpose.msra.mxu0 %v890
    %1194 = vmatprep.mubr.f32.mxu0 0.0
    %1195 = vmatmul.mubr.f32.gmra.mrb[0].mxu0 %v602
    %v1196 = vpop.f32.mrb[0].mxu0
    %v1197 = vadd.f32 0.0, %v1196
    %v1198 = vpop.f32.mrb[0].mxu0
    %v1199 = vadd.f32 0.0, %v1198
    %1200 = vdwg.mxu0
    %1201 = vmatprep.subr.mxu0 0.0
    %1202 = vmatpush1.xpose.msra.mxu0 %v893
    %1203 = vmatprep.subr.mxu0 0.0
    %1204 = vmatpush1.xpose.msra.mxu0 %v896
    %1205 = vmatprep.subr.mxu0 0.0
    %1206 = vmatpush1.xpose.msra.mxu0 %v899
    %1207 = vmatprep.subr.mxu0 0.0
    %1208 = vmatpush1.xpose.msra.mxu0 %v902
    %1209 = vmatprep.subr.mxu0 0.0
    %1210 = vmatpush1.xpose.msra.mxu0 %v905
    %1211 = vmatprep.subr.mxu0 0.0
    %1212 = vmatpush1.xpose.msra.mxu0 %v908
    %1213 = vmatprep.subr.mxu0 0.0
    %1214 = vmatpush1.xpose.msra.mxu0 %v911
    %1215 = vmatprep.subr.mxu0 0.0
    %1216 = vmatpush1.xpose.msra.mxu0 %v914
    %1217 = vmatprep.subr.mxu0 0.0
    %1218 = vmatpush1.xpose.msra.mxu0 %v917
    %1219 = vmatprep.subr.mxu0 0.0
    %1220 = vmatpush1.xpose.msra.mxu0 %v920
    %1221 = vmatprep.subr.mxu0 0.0
    %1222 = vmatpush1.xpose.msra.mxu0 %v923
    %1223 = vmatprep.subr.mxu0 0.0
    %1224 = vmatpush1.xpose.msra.mxu0 %v926
    %1225 = vmatprep.subr.mxu0 0.0
    %1226 = vmatpush1.xpose.msra.mxu0 %v929
    %1227 = vmatprep.subr.mxu0 0.0
    %1228 = vmatpush1.xpose.msra.mxu0 %v932
    %1229 = vmatprep.subr.mxu0 0.0
    %1230 = vmatpush1.xpose.msra.mxu0 %v935
    %1231 = vmatprep.subr.mxu0 0.0
    %1232 = vmatpush1.xpose.msra.mxu0 %v938
    %1233 = vmatprep.subr.mxu0 0.0
    %1234 = vmatpush1.xpose.msra.mxu0 %v941
    %1235 = vmatprep.subr.mxu0 0.0
    %1236 = vmatpush1.xpose.msra.mxu0 %v944
    %1237 = vmatprep.subr.mxu0 0.0
    %1238 = vmatpush1.xpose.msra.mxu0 %v947
    %1239 = vmatprep.subr.mxu0 0.0
    %1240 = vmatpush1.xpose.msra.mxu0 %v950
    %1241 = vmatprep.subr.mxu0 0.0
    %1242 = vmatpush1.xpose.msra.mxu0 %v953
    %1243 = vmatprep.subr.mxu0 0.0
    %1244 = vmatpush1.xpose.msra.mxu0 %v956
    %1245 = vmatprep.subr.mxu0 0.0
    %1246 = vmatpush1.xpose.msra.mxu0 %v959
    %1247 = vmatprep.subr.mxu0 0.0
    %1248 = vmatpush1.xpose.msra.mxu0 %v962
    %1249 = vmatprep.subr.mxu0 0.0
    %1250 = vmatpush1.xpose.msra.mxu0 %v965
    %1251 = vmatprep.subr.mxu0 0.0
    %1252 = vmatpush1.xpose.msra.mxu0 %v968
    %1253 = vmatprep.subr.mxu0 0.0
    %1254 = vmatpush1.xpose.msra.mxu0 %v971
    %1255 = vmatprep.subr.mxu0 0.0
    %1256 = vmatpush1.xpose.msra.mxu0 %v974
    %1257 = vmatprep.subr.mxu0 0.0
    %1258 = vmatpush1.xpose.msra.mxu0 %v977
    %1259 = vmatprep.subr.mxu0 0.0
    %1260 = vmatpush1.xpose.msra.mxu0 %v980
    %1261 = vmatprep.subr.mxu0 0.0
    %1262 = vmatpush1.xpose.msra.mxu0 %v983
    %1263 = vmatprep.subr.mxu0 0.0
    %1264 = vmatpush1.xpose.msra.mxu0 %v986
    %1265 = vmatprep.mubr.f32.mxu0 0.0
    %1266 = vmatmul.mubr.f32.gmra.mrb[0].mxu0 %v602
    %v1267 = vpop.f32.mrb[0].mxu0
    %v1268 = vadd.f32 0.0, %v1267
    %v1269 = vpop.f32.mrb[0].mxu0
    %v1270 = vadd.f32 0.0, %v1269
    %1271 = vdwg.mxu0
    %v1272 = vmul.f32 %v1055, %v1055
    %v1273 = vmul.f32 %v1057, %v1057
    %v1274 = vmul.f32 %v1126, %v1126
    %v1275 = vmul.f32 %v1128, %v1128
    %v1276 = vmul.f32 %v1197, %v1197
    %v1277 = vmul.f32 %v1199, %v1199
    %v1278 = vmul.f32 %v1268, %v1268
    %v1279 = vmul.f32 %v1270, %v1270
    %v1280 = vsel %vm216, %v1272, 0.0
    %v1281 = vsel %vm216, %v1273, 0.0
    %v1282 = vadd.f32 %v1280, %v1281
    %v1283 = vsel %vm216, %v1274, 0.0
    %v1284 = vadd.f32 %v1282, %v1283
    %v1285 = vsel %vm216, %v1275, 0.0
    %v1286 = vadd.f32 %v1284, %v1285
    %v1287 = vsel %vm216, %v1276, 0.0
    %v1288 = vadd.f32 %v1286, %v1287
    %v1289 = vsel %vm216, %v1277, 0.0
    %v1290 = vadd.f32 %v1288, %v1289
    %v1291 = vsel %vm216, %v1278, 0.0
    %v1292 = vadd.f32 %v1290, %v1291
    %v1293 = vsel %vm216, %v1279, 0.0
    %v1294 = vadd.f32 %v1292, %v1293
    %1295 = vadd.xlane.f32.xlu0 %v1294
    %v1296 = vpop.xlane.xlu0 %1295
    %v1297 = vrsqrt.pop %v1296
    %v1298 = vmul.f32 %v1296, %v1297
    %vm1299 = vcmp.eq.f32.partialorder %v1296, inf
    %v1300 = vsel %vm1299, %v1296, %v1298
    %vm1301 = vcmp.eq.f32.partialorder %v1296, 0.0
    %v1302 = vand.u32 %v1296, 2147483648
    %v1303 = vsel %vm1301, %v1302, %v1300
    %v1304 = vmax.f32 %v1303, 1e-12
    %v1305 = vrcp.pop %v1304
    %v1306 = vmul.f32 %v1305, 0.5
    %v1307 = vmul.f32 %v1055, %v1306
    %v1308 = vmul.f32 %v1057, %v1306
    %v1309 = vmul.f32 %v1126, %v1306
    %v1310 = vmul.f32 %v1128, %v1306
    %v1311 = vmul.f32 %v1197, %v1306
    %v1312 = vmul.f32 %v1199, %v1306
    %v1313 = vmul.f32 %v1268, %v1306
    %v1314 = vmul.f32 %v1270, %v1306
    %v1323 = vcombine.low %v1307, %v1308
    %v1324 = vcombine.low %v1309, %v1310
    %v1326 = vunpack.c.l.s4 1983009808
    %v1327 = vunpack.c.0.s8 %v1326
    %v1328 = vlaneseq
    %v1329 = vshrl.u32 %v1328, 7
    %v1330 = vsub.s32 %v1327, %v1329
    %v1331 = vrot.slane %v1323, %v1330
    %v1333 = vunpack.c.l.s4 1983009808
    %v1334 = vunpack.c.0.s8 %v1333
    %v1335 = vlaneseq
    %v1336 = vshrl.u32 %v1335, 7
    %v1337 = vsub.s32 %v1334, %v1336
    %v1338 = vrot.slane %v1324, %v1337
    %v1339 = vcombine.low %v1331, %v1338
    %v1340 = vcombine.low %v1311, %v1312
    %v1341 = vcombine.low %v1313, %v1314
    %v1343 = vunpack.c.l.s4 1983009808
    %v1344 = vunpack.c.0.s8 %v1343
    %v1345 = vlaneseq
    %v1346 = vshrl.u32 %v1345, 7
    %v1347 = vsub.s32 %v1344, %v1346
    %v1348 = vrot.slane %v1340, %v1347
    %v1350 = vunpack.c.l.s4 1983009808
    %v1351 = vunpack.c.0.s8 %v1350
    %v1352 = vlaneseq
    %v1353 = vshrl.u32 %v1352, 7
    %v1354 = vsub.s32 %v1351, %v1353
    %v1355 = vrot.slane %v1341, %v1354
    %v1356 = vcombine.low %v1348, %v1355
    %v1359 = vadd.f32 %v21, %v1339
    %v1360 = vadd.f32 %v22, %v1356
    %v1363 = vcombine.high %v1359, %v1359
    %v1365 = vunpack.c.l.s4 1983009808
    %v1366 = vunpack.c.0.s8 %v1365
    %v1367 = vlaneseq
    %v1368 = vshrl.u32 %v1367, 7
    %v1369 = vsub.s32 %v1366, %v1368
    %v1370 = vrot.slane %v1359, %v1369
    %v1372 = vunpack.c.l.s4 1983009808
    %v1373 = vunpack.c.0.s8 %v1372
    %v1374 = vlaneseq
    %v1375 = vshrl.u32 %v1374, 7
    %v1376 = vsub.s32 %v1373, %v1375
    %v1377 = vrot.slane %v1363, %v1376
    %v1378 = vcombine.high %v1370, %v1370
    %v1379 = vcombine.high %v1377, %v1377
    %v1380 = vcombine.high %v1360, %v1360
    %v1382 = vunpack.c.l.s4 1983009808
    %v1383 = vunpack.c.0.s8 %v1382
    %v1384 = vlaneseq
    %v1385 = vshrl.u32 %v1384, 7
    %v1386 = vsub.s32 %v1383, %v1385
    %v1387 = vrot.slane %v1360, %v1386
    %v1389 = vunpack.c.l.s4 1983009808
    %v1390 = vunpack.c.0.s8 %v1389
    %v1391 = vlaneseq
    %v1392 = vshrl.u32 %v1391, 7
    %v1393 = vsub.s32 %v1390, %v1392
    %v1394 = vrot.slane %v1380, %v1393
    %v1395 = vcombine.high %v1387, %v1387
    %v1396 = vcombine.high %v1394, %v1394
    %1405 = vmatprep.subr.mxu0 0.0
    %1406 = vmatpush1.msra.mxu0 %v23
    %1407 = vmatprep.subr.mxu0 0.0
    %1408 = vmatpush1.msra.mxu0 %v24
    %1409 = vmatprep.subr.mxu0 0.0
    %1410 = vmatpush1.msra.mxu0 %v25
    %1411 = vmatprep.subr.mxu0 0.0
    %1412 = vmatpush1.msra.mxu0 %v26
    %1413 = vmatprep.subr.mxu0 0.0
    %1414 = vmatpush1.msra.mxu0 %v27
    %1415 = vmatprep.subr.mxu0 0.0
    %1416 = vmatpush1.msra.mxu0 %v28
    %1417 = vmatprep.subr.mxu0 0.0
    %1418 = vmatpush1.msra.mxu0 %v29
    %1419 = vmatprep.subr.mxu0 0.0
    %1420 = vmatpush1.msra.mxu0 %v30
    %1421 = vmatprep.subr.mxu0 0.0
    %1422 = vmatpush1.msra.mxu0 %v31
    %1423 = vmatprep.subr.mxu0 0.0
    %1424 = vmatpush1.msra.mxu0 %v32
    %1425 = vmatprep.subr.mxu0 0.0
    %1426 = vmatpush1.msra.mxu0 %v33
    %1427 = vmatprep.subr.mxu0 0.0
    %1428 = vmatpush1.msra.mxu0 %v34
    %1429 = vmatprep.subr.mxu0 0.0
    %1430 = vmatpush1.msra.mxu0 %v35
    %1431 = vmatprep.subr.mxu0 0.0
    %1432 = vmatpush1.msra.mxu0 %v36
    %1433 = vmatprep.subr.mxu0 0.0
    %1434 = vmatpush1.msra.mxu0 %v37
    %1435 = vmatprep.subr.mxu0 0.0
    %1436 = vmatpush1.msra.mxu0 %v38
    %1437 = vmatprep.subr.mxu0 0.0
    %1438 = vmatpush1.msra.mxu0 %v39
    %1439 = vmatprep.subr.mxu0 0.0
    %1440 = vmatpush1.msra.mxu0 %v40
    %1441 = vmatprep.subr.mxu0 0.0
    %1442 = vmatpush1.msra.mxu0 %v41
    %1443 = vmatprep.subr.mxu0 0.0
    %1444 = vmatpush1.msra.mxu0 %v42
    %1445 = vmatprep.subr.mxu0 0.0
    %1446 = vmatpush1.msra.mxu0 %v43
    %1447 = vmatprep.subr.mxu0 0.0
    %1448 = vmatpush1.msra.mxu0 %v44
    %1449 = vmatprep.subr.mxu0 0.0
    %1450 = vmatpush1.msra.mxu0 %v45
    %1451 = vmatprep.subr.mxu0 0.0
    %1452 = vmatpush1.msra.mxu0 %v46
    %1453 = vmatprep.subr.mxu0 0.0
    %1454 = vmatpush1.msra.mxu0 %v47
    %1455 = vmatprep.subr.mxu0 0.0
    %1456 = vmatpush1.msra.mxu0 %v48
    %1457 = vmatprep.subr.mxu0 0.0
    %1458 = vmatpush1.msra.mxu0 %v49
    %1459 = vmatprep.subr.mxu0 0.0
    %1460 = vmatpush1.msra.mxu0 %v50
    %1461 = vmatprep.subr.mxu0 0.0
    %1462 = vmatpush1.msra.mxu0 %v51
    %1463 = vmatprep.subr.mxu0 0.0
    %1464 = vmatpush1.msra.mxu0 %v52
    %1465 = vmatprep.subr.mxu0 0.0
    %1466 = vmatpush1.msra.mxu0 %v53
    %1467 = vmatprep.subr.mxu0 0.0
    %1468 = vmatpush1.msra.mxu0 %v54
    %1469 = vmatprep.mubr.f32.mxu0 %v1378
    %1470 = vmatmul.mubr.f32.gmra.mrb[0].mxu0 %v1370
    %v1471 = vpop.f32.mrb[0].mxu0
    %v1472 = vadd.f32 %v261, %v1471
    %v1473 = vpop.f32.mrb[0].mxu0
    %1474 = vdwg.mxu0
    %1475 = vmatprep.subr.mxu0 0.0
    %1476 = vmatpush1.msra.mxu0 %v55
    %1477 = vmatprep.subr.mxu0 0.0
    %1478 = vmatpush1.msra.mxu0 %v56
    %1479 = vmatprep.subr.mxu0 0.0
    %1480 = vmatpush1.msra.mxu0 %v57
    %1481 = vmatprep.subr.mxu0 0.0
    %1482 = vmatpush1.msra.mxu0 %v58
    %1483 = vmatprep.subr.mxu0 0.0
    %1484 = vmatpush1.msra.mxu0 %v59
    %1485 = vmatprep.subr.mxu0 0.0
    %1486 = vmatpush1.msra.mxu0 %v60
    %1487 = vmatprep.subr.mxu0 0.0
    %1488 = vmatpush1.msra.mxu0 %v61
    %1489 = vmatprep.subr.mxu0 0.0
    %1490 = vmatpush1.msra.mxu0 %v62
    %1491 = vmatprep.subr.mxu0 0.0
    %1492 = vmatpush1.msra.mxu0 %v63
    %1493 = vmatprep.subr.mxu0 0.0
    %1494 = vmatpush1.msra.mxu0 %v64
    %1495 = vmatprep.subr.mxu0 0.0
    %1496 = vmatpush1.msra.mxu0 %v65
    %1497 = vmatprep.subr.mxu0 0.0
    %1498 = vmatpush1.msra.mxu0 %v66
    %1499 = vmatprep.subr.mxu0 0.0
    %1500 = vmatpush1.msra.mxu0 %v67
    %1501 = vmatprep.subr.mxu0 0.0
    %1502 = vmatpush1.msra.mxu0 %v68
    %1503 = vmatprep.subr.mxu0 0.0
    %1504 = vmatpush1.msra.mxu0 %v69
    %1505 = vmatprep.subr.mxu0 0.0
    %1506 = vmatpush1.msra.mxu0 %v70
    %1507 = vmatprep.subr.mxu0 0.0
    %1508 = vmatpush1.msra.mxu0 %v71
    %1509 = vmatprep.subr.mxu0 0.0
    %1510 = vmatpush1.msra.mxu0 %v72
    %1511 = vmatprep.subr.mxu0 0.0
    %1512 = vmatpush1.msra.mxu0 %v73
    %1513 = vmatprep.subr.mxu0 0.0
    %1514 = vmatpush1.msra.mxu0 %v74
    %1515 = vmatprep.subr.mxu0 0.0
    %1516 = vmatpush1.msra.mxu0 %v75
    %1517 = vmatprep.subr.mxu0 0.0
    %1518 = vmatpush1.msra.mxu0 %v76
    %1519 = vmatprep.subr.mxu0 0.0
    %1520 = vmatpush1.msra.mxu0 %v77
    %1521 = vmatprep.subr.mxu0 0.0
    %1522 = vmatpush1.msra.mxu0 %v78
    %1523 = vmatprep.subr.mxu0 0.0
    %1524 = vmatpush1.msra.mxu0 %v79
    %1525 = vmatprep.subr.mxu0 0.0
    %1526 = vmatpush1.msra.mxu0 %v80
    %1527 = vmatprep.subr.mxu0 0.0
    %1528 = vmatpush1.msra.mxu0 %v81
    %1529 = vmatprep.subr.mxu0 0.0
    %1530 = vmatpush1.msra.mxu0 %v82
    %1531 = vmatprep.subr.mxu0 0.0
    %1532 = vmatpush1.msra.mxu0 %v83
    %1533 = vmatprep.subr.mxu0 0.0
    %1534 = vmatpush1.msra.mxu0 %v84
    %1535 = vmatprep.subr.mxu0 0.0
    %1536 = vmatpush1.msra.mxu0 %v85
    %1537 = vmatprep.subr.mxu0 0.0
    %1538 = vmatpush1.msra.mxu0 %v86
    %1539 = vmatprep.mubr.f32.mxu0 %v1379
    %1540 = vmatmul.mubr.f32.gmra.mrb[0].mxu0 %v1377
    %v1541 = vpop.f32.mrb[0].mxu0
    %v1542 = vadd.f32 %v1472, %v1541
    %v1543 = vpop.f32.mrb[0].mxu0
    %1544 = vdwg.mxu0
    %1545 = vmatprep.subr.mxu0 0.0
    %1546 = vmatpush1.msra.mxu0 %v87
    %1547 = vmatprep.subr.mxu0 0.0
    %1548 = vmatpush1.msra.mxu0 %v88
    %1549 = vmatprep.subr.mxu0 0.0
    %1550 = vmatpush1.msra.mxu0 %v89
    %1551 = vmatprep.subr.mxu0 0.0
    %1552 = vmatpush1.msra.mxu0 %v90
    %1553 = vmatprep.subr.mxu0 0.0
    %1554 = vmatpush1.msra.mxu0 %v91
    %1555 = vmatprep.subr.mxu0 0.0
    %1556 = vmatpush1.msra.mxu0 %v92
    %1557 = vmatprep.subr.mxu0 0.0
    %1558 = vmatpush1.msra.mxu0 %v93
    %1559 = vmatprep.subr.mxu0 0.0
    %1560 = vmatpush1.msra.mxu0 %v94
    %1561 = vmatprep.subr.mxu0 0.0
    %1562 = vmatpush1.msra.mxu0 %v95
    %1563 = vmatprep.subr.mxu0 0.0
    %1564 = vmatpush1.msra.mxu0 %v96
    %1565 = vmatprep.subr.mxu0 0.0
    %1566 = vmatpush1.msra.mxu0 %v97
    %1567 = vmatprep.subr.mxu0 0.0
    %1568 = vmatpush1.msra.mxu0 %v98
    %1569 = vmatprep.subr.mxu0 0.0
    %1570 = vmatpush1.msra.mxu0 %v99
    %1571 = vmatprep.subr.mxu0 0.0
    %1572 = vmatpush1.msra.mxu0 %v100
    %1573 = vmatprep.subr.mxu0 0.0
    %1574 = vmatpush1.msra.mxu0 %v101
    %1575 = vmatprep.subr.mxu0 0.0
    %1576 = vmatpush1.msra.mxu0 %v102
    %1577 = vmatprep.subr.mxu0 0.0
    %1578 = vmatpush1.msra.mxu0 %v103
    %1579 = vmatprep.subr.mxu0 0.0
    %1580 = vmatpush1.msra.mxu0 %v104
    %1581 = vmatprep.subr.mxu0 0.0
    %1582 = vmatpush1.msra.mxu0 %v105
    %1583 = vmatprep.subr.mxu0 0.0
    %1584 = vmatpush1.msra.mxu0 %v106
    %1585 = vmatprep.subr.mxu0 0.0
    %1586 = vmatpush1.msra.mxu0 %v107
    %1587 = vmatprep.subr.mxu0 0.0
    %1588 = vmatpush1.msra.mxu0 %v108
    %1589 = vmatprep.subr.mxu0 0.0
    %1590 = vmatpush1.msra.mxu0 %v109
    %1591 = vmatprep.subr.mxu0 0.0
    %1592 = vmatpush1.msra.mxu0 %v110
    %1593 = vmatprep.subr.mxu0 0.0
    %1594 = vmatpush1.msra.mxu0 %v111
    %1595 = vmatprep.subr.mxu0 0.0
    %1596 = vmatpush1.msra.mxu0 %v112
    %1597 = vmatprep.subr.mxu0 0.0
    %1598 = vmatpush1.msra.mxu0 %v113
    %1599 = vmatprep.subr.mxu0 0.0
    %1600 = vmatpush1.msra.mxu0 %v114
    %1601 = vmatprep.subr.mxu0 0.0
    %1602 = vmatpush1.msra.mxu0 %v115
    %1603 = vmatprep.subr.mxu0 0.0
    %1604 = vmatpush1.msra.mxu0 %v116
    %1605 = vmatprep.subr.mxu0 0.0
    %1606 = vmatpush1.msra.mxu0 %v117
    %1607 = vmatprep.subr.mxu0 0.0
    %1608 = vmatpush1.msra.mxu0 %v118
    %1609 = vmatprep.mubr.f32.mxu0 %v1395
    %1610 = vmatmul.mubr.f32.gmra.mrb[0].mxu0 %v1387
    %v1611 = vpop.f32.mrb[0].mxu0
    %v1612 = vadd.f32 %v1542, %v1611
    %v1613 = vpop.f32.mrb[0].mxu0
    %1614 = vdwg.mxu0
    %1615 = vmatprep.subr.mxu0 0.0
    %1616 = vmatpush1.msra.mxu0 %v119
    %1617 = vmatprep.subr.mxu0 0.0
    %1618 = vmatpush1.msra.mxu0 %v120
    %1619 = vmatprep.subr.mxu0 0.0
    %1620 = vmatpush1.msra.mxu0 %v121
    %1621 = vmatprep.subr.mxu0 0.0
    %1622 = vmatpush1.msra.mxu0 %v122
    %1623 = vmatprep.subr.mxu0 0.0
    %1624 = vmatpush1.msra.mxu0 %v123
    %1625 = vmatprep.subr.mxu0 0.0
    %1626 = vmatpush1.msra.mxu0 %v124
    %1627 = vmatprep.subr.mxu0 0.0
    %1628 = vmatpush1.msra.mxu0 %v125
    %1629 = vmatprep.subr.mxu0 0.0
    %1630 = vmatpush1.msra.mxu0 %v126
    %1631 = vmatprep.subr.mxu0 0.0
    %1632 = vmatpush1.msra.mxu0 %v127
    %1633 = vmatprep.subr.mxu0 0.0
    %1634 = vmatpush1.msra.mxu0 %v128
    %1635 = vmatprep.subr.mxu0 0.0
    %1636 = vmatpush1.msra.mxu0 %v129
    %1637 = vmatprep.subr.mxu0 0.0
    %1638 = vmatpush1.msra.mxu0 %v130
    %1639 = vmatprep.subr.mxu0 0.0
    %1640 = vmatpush1.msra.mxu0 %v131
    %1641 = vmatprep.subr.mxu0 0.0
    %1642 = vmatpush1.msra.mxu0 %v132
    %1643 = vmatprep.subr.mxu0 0.0
    %1644 = vmatpush1.msra.mxu0 %v133
    %1645 = vmatprep.subr.mxu0 0.0
    %1646 = vmatpush1.msra.mxu0 %v134
    %1647 = vmatprep.subr.mxu0 0.0
    %1648 = vmatpush1.msra.mxu0 %v135
    %1649 = vmatprep.subr.mxu0 0.0
    %1650 = vmatpush1.msra.mxu0 %v136
    %1651 = vmatprep.subr.mxu0 0.0
    %1652 = vmatpush1.msra.mxu0 %v137
    %1653 = vmatprep.subr.mxu0 0.0
    %1654 = vmatpush1.msra.mxu0 %v138
    %1655 = vmatprep.subr.mxu0 0.0
    %1656 = vmatpush1.msra.mxu0 %v139
    %1657 = vmatprep.subr.mxu0 0.0
    %1658 = vmatpush1.msra.mxu0 %v140
    %1659 = vmatprep.subr.mxu0 0.0
    %1660 = vmatpush1.msra.mxu0 %v141
    %1661 = vmatprep.subr.mxu0 0.0
    %1662 = vmatpush1.msra.mxu0 %v142
    %1663 = vmatprep.subr.mxu0 0.0
    %1664 = vmatpush1.msra.mxu0 %v143
    %1665 = vmatprep.subr.mxu0 0.0
    %1666 = vmatpush1.msra.mxu0 %v144
    %1667 = vmatprep.subr.mxu0 0.0
    %1668 = vmatpush1.msra.mxu0 %v145
    %1669 = vmatprep.subr.mxu0 0.0
    %1670 = vmatpush1.msra.mxu0 %v146
    %1671 = vmatprep.subr.mxu0 0.0
    %1672 = vmatpush1.msra.mxu0 %v147
    %1673 = vmatprep.subr.mxu0 0.0
    %1674 = vmatpush1.msra.mxu0 %v148
    %1675 = vmatprep.subr.mxu0 0.0
    %1676 = vmatpush1.msra.mxu0 %v149
    %1677 = vmatprep.subr.mxu0 0.0
    %1678 = vmatpush1.msra.mxu0 %v150
    %1679 = vmatprep.mubr.f32.mxu0 %v1396
    %1680 = vmatmul.mubr.f32.gmra.mrb[0].mxu0 %v1394
    %v1681 = vpop.f32.mrb[0].mxu0
    %v1682 = vadd.f32 %v1612, %v1681
    %v1683 = vpop.f32.mrb[0].mxu0
    %1684 = vdwg.mxu0
    %v1685 = vsel %vm153, %v1682, -inf
    %1686 = vmax.xlane.f32.xlu0 %v1685
    %v1687 = vpop.xlane.xlu0 %1686
    %v1688 = vsub.f32 %v1682, %v1687
    %v1689 = vmul.f32 %v1688, 1.442695
    %v1690 = vpow.pop %v1689
    %v1691 = vsel %vm153, %v1690, 0.0
    %1692 = vadd.xlane.f32.xlu0 %v1691
    %v1693 = vpop.xlane.xlu0 %1692
    %v1694 = vrcp.pop %v1693
    %v1695 = vmul.f32 %v1690, %v1694
    %v1696 = vsub.f32 %v1695, %v167
    %v1697 = vmul.f32 %v1696, 0.5
    %v1699 = vsel %vm600, %v1697, 0
    %1701 = vmatprep.subr.mxu0 0.0
    %1702 = vmatpush1.xpose.msra.mxu0 %v605
    %1703 = vmatprep.subr.mxu0 0.0
    %1704 = vmatpush1.xpose.msra.mxu0 %v608
    %1705 = vmatprep.subr.mxu0 0.0
    %1706 = vmatpush1.xpose.msra.mxu0 %v611
    %1707 = vmatprep.subr.mxu0 0.0
    %1708 = vmatpush1.xpose.msra.mxu0 %v614
    %1709 = vmatprep.subr.mxu0 0.0
    %1710 = vmatpush1.xpose.msra.mxu0 %v617
    %1711 = vmatprep.subr.mxu0 0.0
    %1712 = vmatpush1.xpose.msra.mxu0 %v620
    %1713 = vmatprep.subr.mxu0 0.0
    %1714 = vmatpush1.xpose.msra.mxu0 %v623
    %1715 = vmatprep.subr.mxu0 0.0
    %1716 = vmatpush1.xpose.msra.mxu0 %v626
    %1717 = vmatprep.subr.mxu0 0.0
    %1718 = vmatpush1.xpose.msra.mxu0 %v629
    %1719 = vmatprep.subr.mxu0 0.0
    %1720 = vmatpush1.xpose.msra.mxu0 %v632
    %1721 = vmatprep.subr.mxu0 0.0
    %1722 = vmatpush1.xpose.msra.mxu0 %v635
    %1723 = vmatprep.subr.mxu0 0.0
    %1724 = vmatpush1.xpose.msra.mxu0 %v638
    %1725 = vmatprep.subr.mxu0 0.0
    %1726 = vmatpush1.xpose.msra.mxu0 %v641
    %1727 = vmatprep.subr.mxu0 0.0
    %1728 = vmatpush1.xpose.msra.mxu0 %v644
    %1729 = vmatprep.subr.mxu0 0.0
    %1730 = vmatpush1.xpose.msra.mxu0 %v647
    %1731 = vmatprep.subr.mxu0 0.0
    %1732 = vmatpush1.xpose.msra.mxu0 %v650
    %1733 = vmatprep.subr.mxu0 0.0
    %1734 = vmatpush1.xpose.msra.mxu0 %v653
    %1735 = vmatprep.subr.mxu0 0.0
    %1736 = vmatpush1.xpose.msra.mxu0 %v656
    %1737 = vmatprep.subr.mxu0 0.0
    %1738 = vmatpush1.xpose.msra.mxu0 %v659
    %1739 = vmatprep.subr.mxu0 0.0
    %1740 = vmatpush1.xpose.msra.mxu0 %v662
    %1741 = vmatprep.subr.mxu0 0.0
    %1742 = vmatpush1.xpose.msra.mxu0 %v665
    %1743 = vmatprep.subr.mxu0 0.0
    %1744 = vmatpush1.xpose.msra.mxu0 %v668
    %1745 = vmatprep.subr.mxu0 0.0
    %1746 = vmatpush1.xpose.msra.mxu0 %v671
    %1747 = vmatprep.subr.mxu0 0.0
    %1748 = vmatpush1.xpose.msra.mxu0 %v674
    %1749 = vmatprep.subr.mxu0 0.0
    %1750 = vmatpush1.xpose.msra.mxu0 %v677
    %1751 = vmatprep.subr.mxu0 0.0
    %1752 = vmatpush1.xpose.msra.mxu0 %v680
    %1753 = vmatprep.subr.mxu0 0.0
    %1754 = vmatpush1.xpose.msra.mxu0 %v683
    %1755 = vmatprep.subr.mxu0 0.0
    %1756 = vmatpush1.xpose.msra.mxu0 %v686
    %1757 = vmatprep.subr.mxu0 0.0
    %1758 = vmatpush1.xpose.msra.mxu0 %v689
    %1759 = vmatprep.subr.mxu0 0.0
    %1760 = vmatpush1.xpose.msra.mxu0 %v692
    %1761 = vmatprep.subr.mxu0 0.0
    %1762 = vmatpush1.xpose.msra.mxu0 %v695
    %1763 = vmatprep.subr.mxu0 0.0
    %1764 = vmatpush1.xpose.msra.mxu0 %v698
    %1765 = vmatprep.mubr.f32.mxu0 0.0
    %1766 = vmatmul.mubr.f32.gmra.mrb[0].mxu0 %v1699
    %v1767 = vpop.f32.mrb[0].mxu0
    %v1768 = vadd.f32 0.0, %v1767
    %v1769 = vpop.f32.mrb[0].mxu0
    %v1770 = vadd.f32 0.0, %v1769
    %1771 = vdwg.mxu0
    %1772 = vmatprep.subr.mxu0 0.0
    %1773 = vmatpush1.xpose.msra.mxu0 %v701
    %1774 = vmatprep.subr.mxu0 0.0
    %1775 = vmatpush1.xpose.msra.mxu0 %v704
    %1776 = vmatprep.subr.mxu0 0.0
    %1777 = vmatpush1.xpose.msra.mxu0 %v707
    %1778 = vmatprep.subr.mxu0 0.0
    %1779 = vmatpush1.xpose.msra.mxu0 %v710
    %1780 = vmatprep.subr.mxu0 0.0
    %1781 = vmatpush1.xpose.msra.mxu0 %v713
    %1782 = vmatprep.subr.mxu0 0.0
    %1783 = vmatpush1.xpose.msra.mxu0 %v716
    %1784 = vmatprep.subr.mxu0 0.0
    %1785 = vmatpush1.xpose.msra.mxu0 %v719
    %1786 = vmatprep.subr.mxu0 0.0
    %1787 = vmatpush1.xpose.msra.mxu0 %v722
    %1788 = vmatprep.subr.mxu0 0.0
    %1789 = vmatpush1.xpose.msra.mxu0 %v725
    %1790 = vmatprep.subr.mxu0 0.0
    %1791 = vmatpush1.xpose.msra.mxu0 %v728
    %1792 = vmatprep.subr.mxu0 0.0
    %1793 = vmatpush1.xpose.msra.mxu0 %v731
    %1794 = vmatprep.subr.mxu0 0.0
    %1795 = vmatpush1.xpose.msra.mxu0 %v734
    %1796 = vmatprep.subr.mxu0 0.0
    %1797 = vmatpush1.xpose.msra.mxu0 %v737
    %1798 = vmatprep.subr.mxu0 0.0
    %1799 = vmatpush1.xpose.msra.mxu0 %v740
    %1800 = vmatprep.subr.mxu0 0.0
    %1801 = vmatpush1.xpose.msra.mxu0 %v743
    %1802 = vmatprep.subr.mxu0 0.0
    %1803 = vmatpush1.xpose.msra.mxu0 %v746
    %1804 = vmatprep.subr.mxu0 0.0
    %1805 = vmatpush1.xpose.msra.mxu0 %v749
    %1806 = vmatprep.subr.mxu0 0.0
    %1807 = vmatpush1.xpose.msra.mxu0 %v752
    %1808 = vmatprep.subr.mxu0 0.0
    %1809 = vmatpush1.xpose.msra.mxu0 %v755
    %1810 = vmatprep.subr.mxu0 0.0
    %1811 = vmatpush1.xpose.msra.mxu0 %v758
    %1812 = vmatprep.subr.mxu0 0.0
    %1813 = vmatpush1.xpose.msra.mxu0 %v761
    %1814 = vmatprep.subr.mxu0 0.0
    %1815 = vmatpush1.xpose.msra.mxu0 %v764
    %1816 = vmatprep.subr.mxu0 0.0
    %1817 = vmatpush1.xpose.msra.mxu0 %v767
    %1818 = vmatprep.subr.mxu0 0.0
    %1819 = vmatpush1.xpose.msra.mxu0 %v770
    %1820 = vmatprep.subr.mxu0 0.0
    %1821 = vmatpush1.xpose.msra.mxu0 %v773
    %1822 = vmatprep.subr.mxu0 0.0
    %1823 = vmatpush1.xpose.msra.mxu0 %v776
    %1824 = vmatprep.subr.mxu0 0.0
    %1825 = vmatpush1.xpose.msra.mxu0 %v779
    %1826 = vmatprep.subr.mxu0 0.0
    %1827 = vmatpush1.xpose.msra.mxu0 %v782
    %1828 = vmatprep.subr.mxu0 0.0
    %1829 = vmatpush1.xpose.msra.mxu0 %v785
    %1830 = vmatprep.subr.mxu0 0.0
    %1831 = vmatpush1.xpose.msra.mxu0 %v788
    %1832 = vmatprep.subr.mxu0 0.0
    %1833 = vmatpush1.xpose.msra.mxu0 %v791
    %1834 = vmatprep.subr.mxu0 0.0
    %1835 = vmatpush1.xpose.msra.mxu0 %v794
    %1836 = vmatprep.mubr.f32.mxu0 0.0
    %1837 = vmatmul.mubr.f32.gmra.mrb[0].mxu0 %v1699
    %v1838 = vpop.f32.mrb[0].mxu0
    %v1839 = vadd.f32 0.0, %v1838
    %v1840 = vpop.f32.mrb[0].mxu0
    %v1841 = vadd.f32 0.0, %v1840
    %1842 = vdwg.mxu0
    %1843 = vmatprep.subr.mxu0 0.0
    %1844 = vmatpush1.xpose.msra.mxu0 %v797
    %1845 = vmatprep.subr.mxu0 0.0
    %1846 = vmatpush1.xpose.msra.mxu0 %v800
    %1847 = vmatprep.subr.mxu0 0.0
    %1848 = vmatpush1.xpose.msra.mxu0 %v803
    %1849 = vmatprep.subr.mxu0 0.0
    %1850 = vmatpush1.xpose.msra.mxu0 %v806
    %1851 = vmatprep.subr.mxu0 0.0
    %1852 = vmatpush1.xpose.msra.mxu0 %v809
    %1853 = vmatprep.subr.mxu0 0.0
    %1854 = vmatpush1.xpose.msra.mxu0 %v812
    %1855 = vmatprep.subr.mxu0 0.0
    %1856 = vmatpush1.xpose.msra.mxu0 %v815
    %1857 = vmatprep.subr.mxu0 0.0
    %1858 = vmatpush1.xpose.msra.mxu0 %v818
    %1859 = vmatprep.subr.mxu0 0.0
    %1860 = vmatpush1.xpose.msra.mxu0 %v821
    %1861 = vmatprep.subr.mxu0 0.0
    %1862 = vmatpush1.xpose.msra.mxu0 %v824
    %1863 = vmatprep.subr.mxu0 0.0
    %1864 = vmatpush1.xpose.msra.mxu0 %v827
    %1865 = vmatprep.subr.mxu0 0.0
    %1866 = vmatpush1.xpose.msra.mxu0 %v830
    %1867 = vmatprep.subr.mxu0 0.0
    %1868 = vmatpush1.xpose.msra.mxu0 %v833
    %1869 = vmatprep.subr.mxu0 0.0
    %1870 = vmatpush1.xpose.msra.mxu0 %v836
    %1871 = vmatprep.subr.mxu0 0.0
    %1872 = vmatpush1.xpose.msra.mxu0 %v839
    %1873 = vmatprep.subr.mxu0 0.0
    %1874 = vmatpush1.xpose.msra.mxu0 %v842
    %1875 = vmatprep.subr.mxu0 0.0
    %1876 = vmatpush1.xpose.msra.mxu0 %v845
    %1877 = vmatprep.subr.mxu0 0.0
    %1878 = vmatpush1.xpose.msra.mxu0 %v848
    %1879 = vmatprep.subr.mxu0 0.0
    %1880 = vmatpush1.xpose.msra.mxu0 %v851
    %1881 = vmatprep.subr.mxu0 0.0
    %1882 = vmatpush1.xpose.msra.mxu0 %v854
    %1883 = vmatprep.subr.mxu0 0.0
    %1884 = vmatpush1.xpose.msra.mxu0 %v857
    %1885 = vmatprep.subr.mxu0 0.0
    %1886 = vmatpush1.xpose.msra.mxu0 %v860
    %1887 = vmatprep.subr.mxu0 0.0
    %1888 = vmatpush1.xpose.msra.mxu0 %v863
    %1889 = vmatprep.subr.mxu0 0.0
    %1890 = vmatpush1.xpose.msra.mxu0 %v866
    %1891 = vmatprep.subr.mxu0 0.0
    %1892 = vmatpush1.xpose.msra.mxu0 %v869
    %1893 = vmatprep.subr.mxu0 0.0
    %1894 = vmatpush1.xpose.msra.mxu0 %v872
    %1895 = vmatprep.subr.mxu0 0.0
    %1896 = vmatpush1.xpose.msra.mxu0 %v875
    %1897 = vmatprep.subr.mxu0 0.0
    %1898 = vmatpush1.xpose.msra.mxu0 %v878
    %1899 = vmatprep.subr.mxu0 0.0
    %1900 = vmatpush1.xpose.msra.mxu0 %v881
    %1901 = vmatprep.subr.mxu0 0.0
    %1902 = vmatpush1.xpose.msra.mxu0 %v884
    %1903 = vmatprep.subr.mxu0 0.0
    %1904 = vmatpush1.xpose.msra.mxu0 %v887
    %1905 = vmatprep.subr.mxu0 0.0
    %1906 = vmatpush1.xpose.msra.mxu0 %v890
    %1907 = vmatprep.mubr.f32.mxu0 0.0
    %1908 = vmatmul.mubr.f32.gmra.mrb[0].mxu0 %v1699
    %v1909 = vpop.f32.mrb[0].mxu0
    %v1910 = vadd.f32 0.0, %v1909
    %v1911 = vpop.f32.mrb[0].mxu0
    %v1912 = vadd.f32 0.0, %v1911
    %1913 = vdwg.mxu0
    %1914 = vmatprep.subr.mxu0 0.0
    %1915 = vmatpush1.xpose.msra.mxu0 %v893
    %1916 = vmatprep.subr.mxu0 0.0
    %1917 = vmatpush1.xpose.msra.mxu0 %v896
    %1918 = vmatprep.subr.mxu0 0.0
    %1919 = vmatpush1.xpose.msra.mxu0 %v899
    %1920 = vmatprep.subr.mxu0 0.0
    %1921 = vmatpush1.xpose.msra.mxu0 %v902
    %1922 = vmatprep.subr.mxu0 0.0
    %1923 = vmatpush1.xpose.msra.mxu0 %v905
    %1924 = vmatprep.subr.mxu0 0.0
    %1925 = vmatpush1.xpose.msra.mxu0 %v908
    %1926 = vmatprep.subr.mxu0 0.0
    %1927 = vmatpush1.xpose.msra.mxu0 %v911
    %1928 = vmatprep.subr.mxu0 0.0
    %1929 = vmatpush1.xpose.msra.mxu0 %v914
    %1930 = vmatprep.subr.mxu0 0.0
    %1931 = vmatpush1.xpose.msra.mxu0 %v917
    %1932 = vmatprep.subr.mxu0 0.0
    %1933 = vmatpush1.xpose.msra.mxu0 %v920
    %1934 = vmatprep.subr.mxu0 0.0
    %1935 = vmatpush1.xpose.msra.mxu0 %v923
    %1936 = vmatprep.subr.mxu0 0.0
    %1937 = vmatpush1.xpose.msra.mxu0 %v926
    %1938 = vmatprep.subr.mxu0 0.0
    %1939 = vmatpush1.xpose.msra.mxu0 %v929
    %1940 = vmatprep.subr.mxu0 0.0
    %1941 = vmatpush1.xpose.msra.mxu0 %v932
    %1942 = vmatprep.subr.mxu0 0.0
    %1943 = vmatpush1.xpose.msra.mxu0 %v935
    %1944 = vmatprep.subr.mxu0 0.0
    %1945 = vmatpush1.xpose.msra.mxu0 %v938
    %1946 = vmatprep.subr.mxu0 0.0
    %1947 = vmatpush1.xpose.msra.mxu0 %v941
    %1948 = vmatprep.subr.mxu0 0.0
    %1949 = vmatpush1.xpose.msra.mxu0 %v944
    %1950 = vmatprep.subr.mxu0 0.0
    %1951 = vmatpush1.xpose.msra.mxu0 %v947
    %1952 = vmatprep.subr.mxu0 0.0
    %1953 = vmatpush1.xpose.msra.mxu0 %v950
    %1954 = vmatprep.subr.mxu0 0.0
    %1955 = vmatpush1.xpose.msra.mxu0 %v953
    %1956 = vmatprep.subr.mxu0 0.0
    %1957 = vmatpush1.xpose.msra.mxu0 %v956
    %1958 = vmatprep.subr.mxu0 0.0
    %1959 = vmatpush1.xpose.msra.mxu0 %v959
    %1960 = vmatprep.subr.mxu0 0.0
    %1961 = vmatpush1.xpose.msra.mxu0 %v962
    %1962 = vmatprep.subr.mxu0 0.0
    %1963 = vmatpush1.xpose.msra.mxu0 %v965
    %1964 = vmatprep.subr.mxu0 0.0
    %1965 = vmatpush1.xpose.msra.mxu0 %v968
    %1966 = vmatprep.subr.mxu0 0.0
    %1967 = vmatpush1.xpose.msra.mxu0 %v971
    %1968 = vmatprep.subr.mxu0 0.0
    %1969 = vmatpush1.xpose.msra.mxu0 %v974
    %1970 = vmatprep.subr.mxu0 0.0
    %1971 = vmatpush1.xpose.msra.mxu0 %v977
    %1972 = vmatprep.subr.mxu0 0.0
    %1973 = vmatpush1.xpose.msra.mxu0 %v980
    %1974 = vmatprep.subr.mxu0 0.0
    %1975 = vmatpush1.xpose.msra.mxu0 %v983
    %1976 = vmatprep.subr.mxu0 0.0
    %1977 = vmatpush1.xpose.msra.mxu0 %v986
    %1978 = vmatprep.mubr.f32.mxu0 0.0
    %1979 = vmatmul.mubr.f32.gmra.mrb[0].mxu0 %v1699
    %v1980 = vpop.f32.mrb[0].mxu0
    %v1981 = vadd.f32 0.0, %v1980
    %v1982 = vpop.f32.mrb[0].mxu0
    %v1983 = vadd.f32 0.0, %v1982
    %1984 = vdwg.mxu0
    %v1985 = vmul.f32 %v1768, %v1768
    %v1986 = vmul.f32 %v1770, %v1770
    %v1987 = vmul.f32 %v1839, %v1839
    %v1988 = vmul.f32 %v1841, %v1841
    %v1989 = vmul.f32 %v1910, %v1910
    %v1990 = vmul.f32 %v1912, %v1912
    %v1991 = vmul.f32 %v1981, %v1981
    %v1992 = vmul.f32 %v1983, %v1983
    %v1993 = vsel %vm216, %v1985, 0.0
    %v1994 = vsel %vm216, %v1986, 0.0
    %v1995 = vadd.f32 %v1993, %v1994
    %v1996 = vsel %vm216, %v1987, 0.0
    %v1997 = vadd.f32 %v1995, %v1996
    %v1998 = vsel %vm216, %v1988, 0.0
    %v1999 = vadd.f32 %v1997, %v1998
    %v2000 = vsel %vm216, %v1989, 0.0
    %v2001 = vadd.f32 %v1999, %v2000
    %v2002 = vsel %vm216, %v1990, 0.0
    %v2003 = vadd.f32 %v2001, %v2002
    %v2004 = vsel %vm216, %v1991, 0.0
    %v2005 = vadd.f32 %v2003, %v2004
    %v2006 = vsel %vm216, %v1992, 0.0
    %v2007 = vadd.f32 %v2005, %v2006
    %2008 = vadd.xlane.f32.xlu0 %v2007
    %v2009 = vpop.xlane.xlu0 %2008
    %v2010 = vrsqrt.pop %v2009
    %v2011 = vmul.f32 %v2009, %v2010
    %vm2012 = vcmp.eq.f32.partialorder %v2009, inf
    %v2013 = vsel %vm2012, %v2009, %v2011
    %vm2014 = vcmp.eq.f32.partialorder %v2009, 0.0
    %v2015 = vand.u32 %v2009, 2147483648
    %v2016 = vsel %vm2014, %v2015, %v2013
    %v2017 = vmax.f32 %v2016, 1e-12
    %v2018 = vrcp.pop %v2017
    %v2019 = vmul.f32 %v2018, 2.0
    %v2020 = vmul.f32 %v1768, %v2019
    %v2021 = vmul.f32 %v1770, %v2019
    %v2022 = vmul.f32 %v1839, %v2019
    %v2023 = vmul.f32 %v1841, %v2019
    %v2024 = vmul.f32 %v1910, %v2019
    %v2025 = vmul.f32 %v1912, %v2019
    %v2026 = vmul.f32 %v1981, %v2019
    %v2027 = vmul.f32 %v1983, %v2019
    %v2036 = vcombine.low %v2020, %v2021
    %v2037 = vcombine.low %v2022, %v2023
    %v2039 = vunpack.c.l.s4 1983009808
    %v2040 = vunpack.c.0.s8 %v2039
    %v2041 = vlaneseq
    %v2042 = vshrl.u32 %v2041, 7
    %v2043 = vsub.s32 %v2040, %v2042
    %v2044 = vrot.slane %v2036, %v2043
    %v2046 = vunpack.c.l.s4 1983009808
    %v2047 = vunpack.c.0.s8 %v2046
    %v2048 = vlaneseq
    %v2049 = vshrl.u32 %v2048, 7
    %v2050 = vsub.s32 %v2047, %v2049
    %v2051 = vrot.slane %v2037, %v2050
    %v2052 = vcombine.low %v2044, %v2051
    %v2053 = vcombine.low %v2024, %v2025
    %v2054 = vcombine.low %v2026, %v2027
    %v2056 = vunpack.c.l.s4 1983009808
    %v2057 = vunpack.c.0.s8 %v2056
    %v2058 = vlaneseq
    %v2059 = vshrl.u32 %v2058, 7
    %v2060 = vsub.s32 %v2057, %v2059
    %v2061 = vrot.slane %v2053, %v2060
    %v2063 = vunpack.c.l.s4 1983009808
    %v2064 = vunpack.c.0.s8 %v2063
    %v2065 = vlaneseq
    %v2066 = vshrl.u32 %v2065, 7
    %v2067 = vsub.s32 %v2064, %v2066
    %v2068 = vrot.slane %v2054, %v2067
    %v2069 = vcombine.low %v2061, %v2068
    %v2072 = vadd.f32 %v21, %v2052
    %v2073 = vadd.f32 %v22, %v2069
    %v2076 = vcombine.high %v2072, %v2072
    %v2078 = vunpack.c.l.s4 1983009808
    %v2079 = vunpack.c.0.s8 %v2078
    %v2080 = vlaneseq
    %v2081 = vshrl.u32 %v2080, 7
    %v2082 = vsub.s32 %v2079, %v2081
    %v2083 = vrot.slane %v2072, %v2082
    %v2085 = vunpack.c.l.s4 1983009808
    %v2086 = vunpack.c.0.s8 %v2085
    %v2087 = vlaneseq
    %v2088 = vshrl.u32 %v2087, 7
    %v2089 = vsub.s32 %v2086, %v2088
    %v2090 = vrot.slane %v2076, %v2089
    %v2091 = vcombine.high %v2083, %v2083
    %v2092 = vcombine.high %v2090, %v2090
    %v2093 = vcombine.high %v2073, %v2073
    %v2095 = vunpack.c.l.s4 1983009808
    %v2096 = vunpack.c.0.s8 %v2095
    %v2097 = vlaneseq
    %v2098 = vshrl.u32 %v2097, 7
    %v2099 = vsub.s32 %v2096, %v2098
    %v2100 = vrot.slane %v2073, %v2099
    %v2102 = vunpack.c.l.s4 1983009808
    %v2103 = vunpack.c.0.s8 %v2102
    %v2104 = vlaneseq
    %v2105 = vshrl.u32 %v2104, 7
    %v2106 = vsub.s32 %v2103, %v2105
    %v2107 = vrot.slane %v2093, %v2106
    %v2108 = vcombine.high %v2100, %v2100
    %v2109 = vcombine.high %v2107, %v2107
    %2118 = vmatprep.subr.mxu0 0.0
    %2119 = vmatpush1.msra.mxu0 %v23
    %2120 = vmatprep.subr.mxu0 0.0
    %2121 = vmatpush1.msra.mxu0 %v24
    %2122 = vmatprep.subr.mxu0 0.0
    %2123 = vmatpush1.msra.mxu0 %v25
    %2124 = vmatprep.subr.mxu0 0.0
    %2125 = vmatpush1.msra.mxu0 %v26
    %2126 = vmatprep.subr.mxu0 0.0
    %2127 = vmatpush1.msra.mxu0 %v27
    %2128 = vmatprep.subr.mxu0 0.0
    %2129 = vmatpush1.msra.mxu0 %v28
    %2130 = vmatprep.subr.mxu0 0.0
    %2131 = vmatpush1.msra.mxu0 %v29
    %2132 = vmatprep.subr.mxu0 0.0
    %2133 = vmatpush1.msra.mxu0 %v30
    %2134 = vmatprep.subr.mxu0 0.0
    %2135 = vmatpush1.msra.mxu0 %v31
    %2136 = vmatprep.subr.mxu0 0.0
    %2137 = vmatpush1.msra.mxu0 %v32
    %2138 = vmatprep.subr.mxu0 0.0
    %2139 = vmatpush1.msra.mxu0 %v33
    %2140 = vmatprep.subr.mxu0 0.0
    %2141 = vmatpush1.msra.mxu0 %v34
    %2142 = vmatprep.subr.mxu0 0.0
    %2143 = vmatpush1.msra.mxu0 %v35
    %2144 = vmatprep.subr.mxu0 0.0
    %2145 = vmatpush1.msra.mxu0 %v36
    %2146 = vmatprep.subr.mxu0 0.0
    %2147 = vmatpush1.msra.mxu0 %v37
    %2148 = vmatprep.subr.mxu0 0.0
    %2149 = vmatpush1.msra.mxu0 %v38
    %2150 = vmatprep.subr.mxu0 0.0
    %2151 = vmatpush1.msra.mxu0 %v39
    %2152 = vmatprep.subr.mxu0 0.0
    %2153 = vmatpush1.msra.mxu0 %v40
    %2154 = vmatprep.subr.mxu0 0.0
    %2155 = vmatpush1.msra.mxu0 %v41
    %2156 = vmatprep.subr.mxu0 0.0
    %2157 = vmatpush1.msra.mxu0 %v42
    %2158 = vmatprep.subr.mxu0 0.0
    %2159 = vmatpush1.msra.mxu0 %v43
    %2160 = vmatprep.subr.mxu0 0.0
    %2161 = vmatpush1.msra.mxu0 %v44
    %2162 = vmatprep.subr.mxu0 0.0
    %2163 = vmatpush1.msra.mxu0 %v45
    %2164 = vmatprep.subr.mxu0 0.0
    %2165 = vmatpush1.msra.mxu0 %v46
    %2166 = vmatprep.subr.mxu0 0.0
    %2167 = vmatpush1.msra.mxu0 %v47
    %2168 = vmatprep.subr.mxu0 0.0
    %2169 = vmatpush1.msra.mxu0 %v48
    %2170 = vmatprep.subr.mxu0 0.0
    %2171 = vmatpush1.msra.mxu0 %v49
    %2172 = vmatprep.subr.mxu0 0.0
    %2173 = vmatpush1.msra.mxu0 %v50
    %2174 = vmatprep.subr.mxu0 0.0
    %2175 = vmatpush1.msra.mxu0 %v51
    %2176 = vmatprep.subr.mxu0 0.0
    %2177 = vmatpush1.msra.mxu0 %v52
    %2178 = vmatprep.subr.mxu0 0.0
    %2179 = vmatpush1.msra.mxu0 %v53
    %2180 = vmatprep.subr.mxu0 0.0
    %2181 = vmatpush1.msra.mxu0 %v54
    %2182 = vmatprep.mubr.f32.mxu0 %v2091
    %2183 = vmatmul.mubr.f32.gmra.mrb[0].mxu0 %v2083
    %v2184 = vpop.f32.mrb[0].mxu0
    %v2185 = vadd.f32 %v261, %v2184
    %v2186 = vpop.f32.mrb[0].mxu0
    %2187 = vdwg.mxu0
    %2188 = vmatprep.subr.mxu0 0.0
    %2189 = vmatpush1.msra.mxu0 %v55
    %2190 = vmatprep.subr.mxu0 0.0
    %2191 = vmatpush1.msra.mxu0 %v56
    %2192 = vmatprep.subr.mxu0 0.0
    %2193 = vmatpush1.msra.mxu0 %v57
    %2194 = vmatprep.subr.mxu0 0.0
    %2195 = vmatpush1.msra.mxu0 %v58
    %2196 = vmatprep.subr.mxu0 0.0
    %2197 = vmatpush1.msra.mxu0 %v59
    %2198 = vmatprep.subr.mxu0 0.0
    %2199 = vmatpush1.msra.mxu0 %v60
    %2200 = vmatprep.subr.mxu0 0.0
    %2201 = vmatpush1.msra.mxu0 %v61
    %2202 = vmatprep.subr.mxu0 0.0
    %2203 = vmatpush1.msra.mxu0 %v62
    %2204 = vmatprep.subr.mxu0 0.0
    %2205 = vmatpush1.msra.mxu0 %v63
    %2206 = vmatprep.subr.mxu0 0.0
    %2207 = vmatpush1.msra.mxu0 %v64
    %2208 = vmatprep.subr.mxu0 0.0
    %2209 = vmatpush1.msra.mxu0 %v65
    %2210 = vmatprep.subr.mxu0 0.0
    %2211 = vmatpush1.msra.mxu0 %v66
    %2212 = vmatprep.subr.mxu0 0.0
    %2213 = vmatpush1.msra.mxu0 %v67
    %2214 = vmatprep.subr.mxu0 0.0
    %2215 = vmatpush1.msra.mxu0 %v68
    %2216 = vmatprep.subr.mxu0 0.0
    %2217 = vmatpush1.msra.mxu0 %v69
    %2218 = vmatprep.subr.mxu0 0.0
    %2219 = vmatpush1.msra.mxu0 %v70
    %2220 = vmatprep.subr.mxu0 0.0
    %2221 = vmatpush1.msra.mxu0 %v71
    %2222 = vmatprep.subr.mxu0 0.0
    %2223 = vmatpush1.msra.mxu0 %v72
    %2224 = vmatprep.subr.mxu0 0.0
    %2225 = vmatpush1.msra.mxu0 %v73
    %2226 = vmatprep.subr.mxu0 0.0
    %2227 = vmatpush1.msra.mxu0 %v74
    %2228 = vmatprep.subr.mxu0 0.0
    %2229 = vmatpush1.msra.mxu0 %v75
    %2230 = vmatprep.subr.mxu0 0.0
    %2231 = vmatpush1.msra.mxu0 %v76
    %2232 = vmatprep.subr.mxu0 0.0
    %2233 = vmatpush1.msra.mxu0 %v77
    %2234 = vmatprep.subr.mxu0 0.0
    %2235 = vmatpush1.msra.mxu0 %v78
    %2236 = vmatprep.subr.mxu0 0.0
    %2237 = vmatpush1.msra.mxu0 %v79
    %2238 = vmatprep.subr.mxu0 0.0
    %2239 = vmatpush1.msra.mxu0 %v80
    %2240 = vmatprep.subr.mxu0 0.0
    %2241 = vmatpush1.msra.mxu0 %v81
    %2242 = vmatprep.subr.mxu0 0.0
    %2243 = vmatpush1.msra.mxu0 %v82
    %2244 = vmatprep.subr.mxu0 0.0
    %2245 = vmatpush1.msra.mxu0 %v83
    %2246 = vmatprep.subr.mxu0 0.0
    %2247 = vmatpush1.msra.mxu0 %v84
    %2248 = vmatprep.subr.mxu0 0.0
    %2249 = vmatpush1.msra.mxu0 %v85
    %2250 = vmatprep.subr.mxu0 0.0
    %2251 = vmatpush1.msra.mxu0 %v86
    %2252 = vmatprep.mubr.f32.mxu0 %v2092
    %2253 = vmatmul.mubr.f32.gmra.mrb[0].mxu0 %v2090
    %v2254 = vpop.f32.mrb[0].mxu0
    %v2255 = vadd.f32 %v2185, %v2254
    %v2256 = vpop.f32.mrb[0].mxu0
    %2257 = vdwg.mxu0
    %2258 = vmatprep.subr.mxu0 0.0
    %2259 = vmatpush1.msra.mxu0 %v87
    %2260 = vmatprep.subr.mxu0 0.0
    %2261 = vmatpush1.msra.mxu0 %v88
    %2262 = vmatprep.subr.mxu0 0.0
    %2263 = vmatpush1.msra.mxu0 %v89
    %2264 = vmatprep.subr.mxu0 0.0
    %2265 = vmatpush1.msra.mxu0 %v90
    %2266 = vmatprep.subr.mxu0 0.0
    %2267 = vmatpush1.msra.mxu0 %v91
    %2268 = vmatprep.subr.mxu0 0.0
    %2269 = vmatpush1.msra.mxu0 %v92
    %2270 = vmatprep.subr.mxu0 0.0
    %2271 = vmatpush1.msra.mxu0 %v93
    %2272 = vmatprep.subr.mxu0 0.0
    %2273 = vmatpush1.msra.mxu0 %v94
    %2274 = vmatprep.subr.mxu0 0.0
    %2275 = vmatpush1.msra.mxu0 %v95
    %2276 = vmatprep.subr.mxu0 0.0
    %2277 = vmatpush1.msra.mxu0 %v96
    %2278 = vmatprep.subr.mxu0 0.0
    %2279 = vmatpush1.msra.mxu0 %v97
    %2280 = vmatprep.subr.mxu0 0.0
    %2281 = vmatpush1.msra.mxu0 %v98
    %2282 = vmatprep.subr.mxu0 0.0
    %2283 = vmatpush1.msra.mxu0 %v99
    %2284 = vmatprep.subr.mxu0 0.0
    %2285 = vmatpush1.msra.mxu0 %v100
    %2286 = vmatprep.subr.mxu0 0.0
    %2287 = vmatpush1.msra.mxu0 %v101
    %2288 = vmatprep.subr.mxu0 0.0
    %2289 = vmatpush1.msra.mxu0 %v102
    %2290 = vmatprep.subr.mxu0 0.0
    %2291 = vmatpush1.msra.mxu0 %v103
    %2292 = vmatprep.subr.mxu0 0.0
    %2293 = vmatpush1.msra.mxu0 %v104
    %2294 = vmatprep.subr.mxu0 0.0
    %2295 = vmatpush1.msra.mxu0 %v105
    %2296 = vmatprep.subr.mxu0 0.0
    %2297 = vmatpush1.msra.mxu0 %v106
    %2298 = vmatprep.subr.mxu0 0.0
    %2299 = vmatpush1.msra.mxu0 %v107
    %2300 = vmatprep.subr.mxu0 0.0
    %2301 = vmatpush1.msra.mxu0 %v108
    %2302 = vmatprep.subr.mxu0 0.0
    %2303 = vmatpush1.msra.mxu0 %v109
    %2304 = vmatprep.subr.mxu0 0.0
    %2305 = vmatpush1.msra.mxu0 %v110
    %2306 = vmatprep.subr.mxu0 0.0
    %2307 = vmatpush1.msra.mxu0 %v111
    %2308 = vmatprep.subr.mxu0 0.0
    %2309 = vmatpush1.msra.mxu0 %v112
    %2310 = vmatprep.subr.mxu0 0.0
    %2311 = vmatpush1.msra.mxu0 %v113
    %2312 = vmatprep.subr.mxu0 0.0
    %2313 = vmatpush1.msra.mxu0 %v114
    %2314 = vmatprep.subr.mxu0 0.0
    %2315 = vmatpush1.msra.mxu0 %v115
    %2316 = vmatprep.subr.mxu0 0.0
    %2317 = vmatpush1.msra.mxu0 %v116
    %2318 = vmatprep.subr.mxu0 0.0
    %2319 = vmatpush1.msra.mxu0 %v117
    %2320 = vmatprep.subr.mxu0 0.0
    %2321 = vmatpush1.msra.mxu0 %v118
    %2322 = vmatprep.mubr.f32.mxu0 %v2108
    %2323 = vmatmul.mubr.f32.gmra.mrb[0].mxu0 %v2100
    %v2324 = vpop.f32.mrb[0].mxu0
    %v2325 = vadd.f32 %v2255, %v2324
    %v2326 = vpop.f32.mrb[0].mxu0
    %2327 = vdwg.mxu0
    %2328 = vmatprep.subr.mxu0 0.0
    %2329 = vmatpush1.msra.mxu0 %v119
    %2330 = vmatprep.subr.mxu0 0.0
    %2331 = vmatpush1.msra.mxu0 %v120
    %2332 = vmatprep.subr.mxu0 0.0
    %2333 = vmatpush1.msra.mxu0 %v121
    %2334 = vmatprep.subr.mxu0 0.0
    %2335 = vmatpush1.msra.mxu0 %v122
    %2336 = vmatprep.subr.mxu0 0.0
    %2337 = vmatpush1.msra.mxu0 %v123
    %2338 = vmatprep.subr.mxu0 0.0
    %2339 = vmatpush1.msra.mxu0 %v124
    %2340 = vmatprep.subr.mxu0 0.0
    %2341 = vmatpush1.msra.mxu0 %v125
    %2342 = vmatprep.subr.mxu0 0.0
    %2343 = vmatpush1.msra.mxu0 %v126
    %2344 = vmatprep.subr.mxu0 0.0
    %2345 = vmatpush1.msra.mxu0 %v127
    %2346 = vmatprep.subr.mxu0 0.0
    %2347 = vmatpush1.msra.mxu0 %v128
    %2348 = vmatprep.subr.mxu0 0.0
    %2349 = vmatpush1.msra.mxu0 %v129
    %2350 = vmatprep.subr.mxu0 0.0
    %2351 = vmatpush1.msra.mxu0 %v130
    %2352 = vmatprep.subr.mxu0 0.0
    %2353 = vmatpush1.msra.mxu0 %v131
    %2354 = vmatprep.subr.mxu0 0.0
    %2355 = vmatpush1.msra.mxu0 %v132
    %2356 = vmatprep.subr.mxu0 0.0
    %2357 = vmatpush1.msra.mxu0 %v133
    %2358 = vmatprep.subr.mxu0 0.0
    %2359 = vmatpush1.msra.mxu0 %v134
    %2360 = vmatprep.subr.mxu0 0.0
    %2361 = vmatpush1.msra.mxu0 %v135
    %2362 = vmatprep.subr.mxu0 0.0
    %2363 = vmatpush1.msra.mxu0 %v136
    %2364 = vmatprep.subr.mxu0 0.0
    %2365 = vmatpush1.msra.mxu0 %v137
    %2366 = vmatprep.subr.mxu0 0.0
    %2367 = vmatpush1.msra.mxu0 %v138
    %2368 = vmatprep.subr.mxu0 0.0
    %2369 = vmatpush1.msra.mxu0 %v139
    %2370 = vmatprep.subr.mxu0 0.0
    %2371 = vmatpush1.msra.mxu0 %v140
    %2372 = vmatprep.subr.mxu0 0.0
    %2373 = vmatpush1.msra.mxu0 %v141
    %2374 = vmatprep.subr.mxu0 0.0
    %2375 = vmatpush1.msra.mxu0 %v142
    %2376 = vmatprep.subr.mxu0 0.0
    %2377 = vmatpush1.msra.mxu0 %v143
    %2378 = vmatprep.subr.mxu0 0.0
    %2379 = vmatpush1.msra.mxu0 %v144
    %2380 = vmatprep.subr.mxu0 0.0
    %2381 = vmatpush1.msra.mxu0 %v145
    %2382 = vmatprep.subr.mxu0 0.0
    %2383 = vmatpush1.msra.mxu0 %v146
    %2384 = vmatprep.subr.mxu0 0.0
    %2385 = vmatpush1.msra.mxu0 %v147
    %2386 = vmatprep.subr.mxu0 0.0
    %2387 = vmatpush1.msra.mxu0 %v148
    %2388 = vmatprep.subr.mxu0 0.0
    %2389 = vmatpush1.msra.mxu0 %v149
    %2390 = vmatprep.subr.mxu0 0.0
    %2391 = vmatpush1.msra.mxu0 %v150
    %2392 = vmatprep.mubr.f32.mxu0 %v2109
    %2393 = vmatmul.mubr.f32.gmra.mrb[0].mxu0 %v2107
    %v2394 = vpop.f32.mrb[0].mxu0
    %v2395 = vadd.f32 %v2325, %v2394
    %v2396 = vpop.f32.mrb[0].mxu0
    %2397 = vdwg.mxu0
    %v2398 = vsel %vm153, %v2395, -inf
    %2399 = vmax.xlane.f32.xlu0 %v2398
    %v2400 = vpop.xlane.xlu0 %2399
    %v2401 = vsub.f32 %v2395, %v2400
    %v2402 = vmul.f32 %v2401, 1.442695
    %v2403 = vpow.pop %v2402
    %v2404 = vsel %vm153, %v2403, 0.0
    %2405 = vadd.xlane.f32.xlu0 %v2404
    %v2406 = vpop.xlane.xlu0 %2405
    %v2407 = vlog2.pop %v2406
    %v2408 = vmul.f32 %v2407, 0.6931472
    %v2409 = vsub.f32 %v2401, %v2408
    %v2410 = vsub.f32 %v165, %v2409
    %v2411 = vmul.f32 %v167, %v2410
    %v2412 = vsel %vm153, %v2411, 0.0
    %2413 = vadd.xlane.f32.xlu0 %v2412
    %v2414 = vpop.xlane.xlu0 %2413
    %v2415 = vrot.slane %v2414, 4
    %v2416 = vadd.f32 %v2414, %v2415
    %v2417 = vrot.slane %v2416, 2
    %v2418 = vadd.f32 %v2416, %v2417
    %v2419 = vrot.slane %v2418, 1
    %v2420 = vadd.f32 %v2418, %v2419
    %s2421 = vtos %v2420
    %s2422 = smul.f32 %s2421, 0.5
    %s2423 = scalar_lea.smem [#allocation2], 0
    %2424 = sst [smem:[%s2423]] %s2422
    // Predicated region
    $region22: #{tpu_custom_call.1} parent=1 // pred_check
      _
    $region23: #{tpu_custom_call.1} parent=1 // pred_check_branch
      %2426 = sbr.rel (0) target = $region25
    $region24: #{tpu_custom_call.1} parent=1 // pred_region
      %s2428 = ssub.s32 16, 16
      %2429 = vsyncadd [#allocation3], %s2428
      %2432 = dma.smem_to_hbm [#allocation2], 16, %s5, [#allocation3]
    $region25: #{tpu_custom_call.1} parent=1 // pred_fallthru
      _
    // Predicated region
    $region26: #{tpu_custom_call.1} parent=1 // pred_check
      _
    $region27: #{tpu_custom_call.1} parent=1 // pred_check_branch
      %2434 = sbr.rel (0) target = $region29
    $region28: #{tpu_custom_call.1} parent=1 // pred_region
      %2435 = dma.done [#allocation3], 16
    $region29: #{tpu_custom_call.1} parent=1 // pred_fallthru
      _
    %2436 = sfence
    %2437 = vsyncpa [#allocation3], 1

</llo_original>
